<compile_context>
chip_gen: v7x
topology: tpu7x:2x2x1
jax: 0.10.0
libtpu: 0.0.40
codegen_flags: <defaults>
</compile_context>

<pallas_src>
import functools

import jax
import jax.numpy as jnp
from jax.experimental import pallas as pl
from jax.experimental.pallas import tpu as pltpu

LN_EPS = 1e-12  # BERT LayerNorm eps


def _hw_config():
    """Per-generation tiles / VMEM limit.  v5e/v6e: 128 MiB physical VMEM ->
    96 MiB scoped + big tiles.  v7x: 64 MiB per TensorCore -> stay <= 48 MiB."""
    vmem_phys = None
    try:
        vmem_phys = getattr(pltpu.get_tpu_info(), "vmem_capacity_bytes", None)
    except Exception:
        vmem_phys = None
    if vmem_phys is None:
        vmem_phys = 64 * 1024 * 1024          # conservative (v7x per-TC)
    if vmem_phys >= 100 * 1024 * 1024:        # v5e / v6e
        return {"vmem_limit": 96 * 1024 * 1024,
                "tm": 1024, "tn": 1536, "tk": 768, "tm_ln": 1024, "tq": 256}
    # v7x (64 MiB/TC): keep acc + double-buffered blocks well under 48 MiB.
    return {"vmem_limit": 48 * 1024 * 1024,
            "tm": 512, "tn": 1536, "tk": 768, "tm_ln": 512, "tq": 128}


HW = _hw_config()
VMEM_LIMIT = HW["vmem_limit"]


def _pick_tile(dim, pref, align):
    """Largest tile <= pref that evenly divides dim, stepping on `align`
    multiples (256 for lane dims -> full MXU passes on v6e/v7x); falls back to
    the full dim (always legal for the last-two-dims rule)."""
    if dim <= pref:
        return dim
    t = (pref // align) * align
    while t >= align:
        if dim % t == 0:
            return t
        t -= align
    return dim


# ----------------------------- Pallas kernels ------------------------------ #

def _dense_kernel(x_ref, w_ref, b_ref, o_ref, acc_ref, *, act):
    k = pl.program_id(2)

    @pl.when(k == 0)
    def _():
        acc_ref[...] = jnp.zeros_like(acc_ref)

    acc_ref[...] += jnp.dot(x_ref[...], w_ref[...],
                            preferred_element_type=jnp.float32)

    @pl.when(k == pl.num_programs(2) - 1)
    def _():
        y = acc_ref[...] + b_ref[...]          # bias f32, (1, tn) broadcasts
        if act == "gelu":
            # TODO(synk): HF BERT default is exact erf-GELU; tanh approximation
            # kept for Mosaic-lowering safety (small numeric deviation).
            y = jax.nn.gelu(y, approximate=True)
        elif act == "tanh":
            y = jnp.tanh(y)
        o_ref[...] = y.astype(o_ref.dtype)


def dense(x, w, b, act="none", out_dtype=None, tm=None, tn=None, tk=None):
    """Tiled matmul: x [M,K] (bf16) @ w [K,N] (bf16) + b [1,N] (f32), f32 acc."""
    M, K = x.shape
    N = w.shape[1]
    out_dtype = out_dtype or x.dtype
    tm = _pick_tile(M, tm or HW["tm"], 8)
    tn = _pick_tile(N, tn or HW["tn"], 256)
    tk = _pick_tile(K, tk or HW["tk"], 256)
    grid = (M // tm, N // tn, K // tk)
    return pl.pallas_call(
        functools.partial(_dense_kernel, act=act),
        out_shape=jax.ShapeDtypeStruct((M, N), out_dtype),
        grid=grid,
        in_specs=[
            pl.BlockSpec((tm, tk), lambda i, j, k: (i, k)),
            pl.BlockSpec((tk, tn), lambda i, j, k: (k, j)),
            pl.BlockSpec((1, tn), lambda i, j, k: (0, j)),
        ],
        out_specs=pl.BlockSpec((tm, tn), lambda i, j, k: (i, j)),
        scratch_shapes=[pltpu.VMEM((tm, tn), jnp.float32)],
        compiler_params=pltpu.CompilerParams(
            dimension_semantics=("parallel", "parallel", "arbitrary"),
            vmem_limit_bytes=VMEM_LIMIT),
    )(x, w, b)


def _dense_add_ln_kernel(x_ref, w_ref, b_ref, res_ref, g_ref, bb_ref,
                         o_ref, acc_ref, *, eps):
    k = pl.program_id(1)

    @pl.when(k == 0)
    def _():
        acc_ref[...] = jnp.zeros_like(acc_ref)

    acc_ref[...] += jnp.dot(x_ref[...], w_ref[...],
                            preferred_element_type=jnp.float32)

    @pl.when(k == pl.num_programs(1) - 1)
    def _():
        h = acc_ref[...] + b_ref[...] + res_ref[...].astype(jnp.float32)
        mu = jnp.mean(h, axis=-1, keepdims=True)
        var = jnp.mean((h - mu) * (h - mu), axis=-1, keepdims=True)
        inv = jax.lax.rsqrt(var + eps)
        o_ref[...] = ((h - mu) * inv * g_ref[...] + bb_ref[...]).astype(o_ref.dtype)


def dense_add_ln(x, w, b, res, gamma, beta, *, out_dtype=None,
                 tm=None, tk=None, eps=LN_EPS):
    """LayerNorm(res + x @ w + b), LN over last axis. Full N per block so the
    epilogue sees the whole row (tn == N)."""
    M, K = x.shape
    N = w.shape[1]
    out_dtype = out_dtype or x.dtype
    tm = _pick_tile(M, tm or HW["tm"], 8)
    tk = _pick_tile(K, tk or HW["tk"], 256)
    grid = (M // tm, K // tk)
    return pl.pallas_call(
        functools.partial(_dense_add_ln_kernel, eps=eps),
        out_shape=jax.ShapeDtypeStruct((M, N), out_dtype),
        grid=grid,
        in_specs=[
            pl.BlockSpec((tm, tk), lambda i, k: (i, k)),
            pl.BlockSpec((tk, N), lambda i, k: (k, 0)),
            pl.BlockSpec((1, N), lambda i, k: (0, 0)),
            pl.BlockSpec((tm, N), lambda i, k: (i, 0)),
            pl.BlockSpec((1, N), lambda i, k: (0, 0)),
            pl.BlockSpec((1, N), lambda i, k: (0, 0)),
        ],
        out_specs=pl.BlockSpec((tm, N), lambda i, k: (i, 0)),
        scratch_shapes=[pltpu.VMEM((tm, N), jnp.float32)],
        compiler_params=pltpu.CompilerParams(
            dimension_semantics=("parallel", "arbitrary"),
            vmem_limit_bytes=VMEM_LIMIT),
    )(x, w, b, res, gamma, beta)


def _ln_kernel(x_ref, g_ref, b_ref, o_ref, *, eps):
    x = x_ref[...].astype(jnp.float32)
    mu = jnp.mean(x, axis=-1, keepdims=True)
    var = jnp.mean((x - mu) * (x - mu), axis=-1, keepdims=True)
    inv = jax.lax.rsqrt(var + eps)
    o_ref[...] = ((x - mu) * inv * g_ref[...] + b_ref[...]).astype(o_ref.dtype)


def layernorm(x, gamma, beta, *, out_dtype=None, tm=None, eps=LN_EPS):
    """LayerNorm over the last axis (no residual)."""
    M, H = x.shape
    out_dtype = out_dtype or x.dtype
    tm = _pick_tile(M, tm or HW["tm_ln"], 8)
    return pl.pallas_call(
        functools.partial(_ln_kernel, eps=eps),
        out_shape=jax.ShapeDtypeStruct((M, H), out_dtype),
        grid=(M // tm,),
        in_specs=[
            pl.BlockSpec((tm, H), lambda i: (i, 0)),
            pl.BlockSpec((1, H), lambda i: (0, 0)),
            pl.BlockSpec((1, H), lambda i: (0, 0)),
        ],
        out_specs=pl.BlockSpec((tm, H), lambda i: (i, 0)),
        compiler_params=pltpu.CompilerParams(
            dimension_semantics=("parallel",), vmem_limit_bytes=VMEM_LIMIT),
    )(x, gamma, beta)


def _attn_kernel(qkv_ref, m_ref, o_ref, *, nH, dH, tq):
    # qkv_ref block: (1, S, 3H) bf16 (full sequence; constant index across the
    # q-chunk axis -> not re-DMA'd).  m_ref block: (1, 1, S) f32 additive mask.
    # o_ref block: (1, tq, H) lane-dense bf16.
    H = nH * dH
    qi = pl.program_id(1)
    q0 = qi * tq
    if tq % 8 == 0:
        q0 = pl.multiple_of(q0, 8)
    mask = m_ref[0]                       # (1, S) broadcasts over (tq, S)
    for h in range(nH):                   # static unroll over heads
        q = qkv_ref[0, pl.ds(q0, tq), h * dH:(h + 1) * dH]               # (tq, dH)
        k = qkv_ref[0, :, H + h * dH:H + (h + 1) * dH]                   # (S, dH)
        v = qkv_ref[0, :, 2 * H + h * dH:2 * H + (h + 1) * dH]           # (S, dH)
        # 1/sqrt(dH) already folded into wq/bq.
        s = jnp.einsum("qd,kd->qk", q, k,
                       preferred_element_type=jnp.float32) + mask        # (tq, S)
        s = s - jnp.max(s, axis=-1, keepdims=True)
        p = jnp.exp(s)
        p = p * pl.reciprocal(jnp.sum(p, axis=-1, keepdims=True), approx=True)
        pv = jnp.dot(p.astype(v.dtype), v, preferred_element_type=jnp.float32)
        # Early bf16 cast + per-head writeback (no f32 concat of all heads).
        o_ref[0, :, h * dH:(h + 1) * dH] = pv.astype(o_ref.dtype)
    # TODO(synk): for very long S on v7x, add key-chunked online-softmax so the
    # working set becomes S-independent.


def attention(qkv, add_mask, *, nH):
    """qkv: [B, S, 3H] fused projections (scale pre-folded);
    add_mask: [B, 1, S] additive f32 (-1e9 on pads). Returns [B, S, H]."""
    B, S, H3 = qkv.shape
    H = H3 // 3
    dH = H // nH
    tq = _pick_tile(S, HW["tq"], 8)
    grid = (B, S // tq)
    return pl.pallas_call(
        functools.partial(_attn_kernel, nH=nH, dH=dH, tq=tq),
        out_shape=jax.ShapeDtypeStruct((B, S, H), qkv.dtype),
        grid=grid,
        in_specs=[
            pl.BlockSpec((1, S, H3), lambda b, qi: (b, 0, 0)),
            pl.BlockSpec((1, 1, S), lambda b, qi: (b, 0, 0)),
        ],
        out_specs=pl.BlockSpec((1, tq, H), lambda b, qi: (b, qi, 0)),
        compiler_params=pltpu.CompilerParams(
            dimension_semantics=("parallel", "parallel"),
            vmem_limit_bytes=VMEM_LIMIT),
    )(qkv, add_mask)


# -------------------------- model (JAX glue + kernels) --------------------- #

def init_params(key, *, vocab, max_pos, H, nH, inter, layers, num_labels):
    def nrm(k, shape):
        return (0.02 * jax.random.normal(k, shape)).astype(jnp.float32)

    keys = iter(jax.random.split(key, 8 + layers * 6))
    p = {
        "word_emb": nrm(next(keys), (vocab, H)),
        "pos_emb": nrm(next(keys), (max_pos, H)),
        "type_emb": nrm(next(keys), (2, H)),
        "emb_ln_g": jnp.ones((1, H), jnp.float32),
        "emb_ln_b": jnp.zeros((1, H), jnp.float32),
        "pooler_w": nrm(next(keys), (H, H)),
        "pooler_b": jnp.zeros((1, H), jnp.float32),
        "cls_w": nrm(next(keys), (H, num_labels)),
        "cls_b": jnp.zeros((1, num_labels), jnp.float32),
        "layers": [],
    }
    for _ in range(layers):
        p["layers"].append({
            "wq": nrm(next(keys), (H, H)), "bq": jnp.zeros((1, H), jnp.float32),
            "wk": nrm(next(keys), (H, H)), "bk": jnp.zeros((1, H), jnp.float32),
            "wv": nrm(next(keys), (H, H)), "bv": jnp.zeros((1, H), jnp.float32),
            "wo": nrm(next(keys), (H, H)), "bo": jnp.zeros((1, H), jnp.float32),
            "ln1_g": jnp.ones((1, H), jnp.float32), "ln1_b": jnp.zeros((1, H), jnp.float32),
            "wi": nrm(next(keys), (H, inter)), "bi": jnp.zeros((1, inter), jnp.float32),
            "wo2": nrm(next(keys), (inter, H)), "bo2": jnp.zeros((1, H), jnp.float32),
            "ln2_g": jnp.ones((1, H), jnp.float32), "ln2_b": jnp.zeros((1, H), jnp.float32),
        })
    return p


def prepare_params(params, nH):
    """One-time (load-time) weight preprocessing, hoisted out of the jitted
    forward: QKV weight fusion, 1/sqrt(dH) fold into wq/bq, f32->bf16 casts of
    all matmul weights.  Call once and reuse the result for every forward."""
    H = params["word_emb"].shape[-1]
    dH = H // nH
    scale = 1.0 / (dH ** 0.5)
    prep = {
        "word_emb": params["word_emb"],
        "pos_emb": params["pos_emb"],
        "type_emb": params["type_emb"],
        "emb_ln_g": params["emb_ln_g"], "emb_ln_b": params["emb_ln_b"],
        "pooler_w": params["pooler_w"].astype(jnp.bfloat16),
        "pooler_b": params["pooler_b"],
        "cls_w": params["cls_w"], "cls_b": params["cls_b"],
        "layers": [],
    }
    for lp in params["layers"]:
        prep["layers"].append({
            "wqkv": jnp.concatenate([lp["wq"] * scale, lp["wk"], lp["wv"]],
                                    axis=1).astype(jnp.bfloat16),
            "bqkv": jnp.concatenate([lp["bq"] * scale, lp["bk"], lp["bv"]], axis=1),
            "wo": lp["wo"].astype(jnp.bfloat16), "bo": lp["bo"],
            "ln1_g": lp["ln1_g"], "ln1_b": lp["ln1_b"],
            "wi": lp["wi"].astype(jnp.bfloat16), "bi": lp["bi"],
            "wo2": lp["wo2"].astype(jnp.bfloat16), "bo2": lp["bo2"],
            "ln2_g": lp["ln2_g"], "ln2_b": lp["ln2_b"],
        })
    return prep


def trans_gc_forward(prep, input_ids, attention_mask, labels, *, nH):
    """Tensor portion of TransGC.forward: BERT encoder -> pooler -> classifier
    -> softmax probs, argmax preds, and mean cross-entropy loss.
    `prep` must come from prepare_params() (weight prep is NOT re-done here)."""
    B, S = input_ids.shape
    H = prep["word_emb"].shape[-1]

    # Embeddings (gathers are plain-JAX glue).
    # TODO(synk): token_type_ids assumed all-zero (single-segment inputs).
    emb = (jnp.take(prep["word_emb"], input_ids, axis=0)
           + prep["pos_emb"][:S][None, :, :]
           + prep["type_emb"][0][None, None, :])
    x = layernorm(emb.reshape(B * S, H), prep["emb_ln_g"], prep["emb_ln_b"],
                  out_dtype=jnp.bfloat16)                                  # [B*S, H]

    add_mask = ((1.0 - attention_mask.astype(jnp.float32)) * -1e9)[:, None, :]  # [B,1,S]

    for lp in prep["layers"]:
        qkv = dense(x, lp["wqkv"], lp["bqkv"], out_dtype=jnp.bfloat16)     # [B*S, 3H]
        ctx = attention(qkv.reshape(B, S, 3 * H), add_mask, nH=nH)         # [B, S, H]
        h = dense_add_ln(ctx.reshape(B * S, H), lp["wo"], lp["bo"],
                         res=x, gamma=lp["ln1_g"], beta=lp["ln1_b"],
                         out_dtype=jnp.bfloat16)
        inter = dense(h, lp["wi"], lp["bi"], act="gelu", out_dtype=jnp.bfloat16)
        x = dense_add_ln(inter, lp["wo2"], lp["bo2"],
                         res=h, gamma=lp["ln2_g"], beta=lp["ln2_b"],
                         out_dtype=jnp.bfloat16)

    # Pooler: tanh(W * h_CLS + b).
    cls_tok = x.reshape(B, S, H)[:, 0, :]
    pooled = dense(cls_tok, prep["pooler_w"], prep["pooler_b"], act="tanh",
                   out_dtype=jnp.float32)                                  # [B, H]

    # Classifier + softmax + mean CE: [B, 10] lane dim < 128 -> plain JAX
    # (pallas_call overhead would dwarf the work).
    logits = pooled @ prep["cls_w"] + prep["cls_b"]
    logp = jax.nn.log_softmax(logits.astype(jnp.float32), axis=-1)
    probs = jnp.exp(logp)
    loss = -jnp.mean(jnp.take_along_axis(logp, labels[:, None], axis=1))
    preds = jnp.argmax(probs, axis=-1)
    # TODO(synk): tactics-JSON lookup (get_gc_pred) and target construction
    # (get_gc_targets) are string/host-side logic with no tensor equivalent.
    return preds, labels, loss, probs


if __name__ == "__main__":
    B, S, H, nH, L, INTER, NUM_LABELS, VOCAB, MAX_POS = 2, 8, 32, 4, 2, 64, 10, 64, 16

    root = jax.random.PRNGKey(0)
    k_param, k_ids, k_lab = jax.random.split(root, 3)

    params = init_params(k_param, vocab=VOCAB, max_pos=MAX_POS, H=H, nH=nH,
                         inter=INTER, layers=L, num_labels=NUM_LABELS)
    # Weight prep runs ONCE, outside the jitted forward.
    prep = prepare_params(params, nH)

    input_ids = jax.random.randint(k_ids, (B, S), 0, VOCAB, dtype=jnp.int32)
    attention_mask = jnp.array([[1] * S, [1] * (S - 2) + [0, 0]], dtype=jnp.int32)
    labels = jax.random.randint(k_lab, (B,), 0, NUM_LABELS, dtype=jnp.int32)

    fwd = jax.jit(functools.partial(trans_gc_forward, nH=nH))
    preds, trues, loss, probs = fwd(prep, input_ids, attention_mask, labels)
    jax.block_until_ready((preds, trues, loss, probs))
    print("KERNEL_OK")
</pallas_src>

<mosaic_0001>
module attributes {stable_mosaic.version = 11 : i64} {
  func.func @_ln_kernel(%arg0: i32, %arg1: memref<16x32xf32, #tpu.memory_space<vmem>>, %arg2: memref<1x32xf32, #tpu.memory_space<vmem>>, %arg3: memref<1x32xf32, #tpu.memory_space<vmem>>, %arg4: memref<16x32xbf16, #tpu.memory_space<vmem>>) attributes {dimension_semantics = [#tpu.dimension_semantics<parallel>], iteration_bounds = array<i64: 1>, scalar_prefetch = 0 : i64, scratch_operands = 0 : i64, tpu.core_type = #tpu.core_type<tc>, window_params = [{transform_indices = @transform_0, window_bounds = array<i64: 16, 32>}, {pipeline_mode = #tpu.pipeline_mode<synchronous>, transform_indices = @transform_1, window_bounds = array<i64: 1, 32>}, {pipeline_mode = #tpu.pipeline_mode<synchronous>, transform_indices = @transform_2, window_bounds = array<i64: 1, 32>}, {transform_indices = @transform_3, window_bounds = array<i64: 16, 32>}]} {
    %c0 = arith.constant 0 : index
    %c0_0 = arith.constant 0 : index
    %0 = vector.load %arg1[%c0, %c0_0] : memref<16x32xf32, #tpu.memory_space<vmem>>, vector<16x32xf32>
    %cst = arith.constant dense<0.000000e+00> : vector<16xf32>
    %1 = vector.multi_reduction <add>, %0, %cst [1] : vector<16x32xf32> to vector<16xf32>
    %2 = vector.shape_cast %1 : vector<16xf32> to vector<16x1xf32>
    %cst_1 = arith.constant 3.200000e+01 : f32
    %3 = vector.broadcast %cst_1 : f32 to vector<16x1xf32>
    %4 = arith.divf %2, %3 : vector<16x1xf32>
    %5 = vector.broadcast %4 : vector<16x1xf32> to vector<16x32xf32>
    %6 = arith.subf %0, %5 : vector<16x32xf32>
    %7 = vector.broadcast %4 : vector<16x1xf32> to vector<16x32xf32>
    %8 = arith.subf %0, %7 : vector<16x32xf32>
    %9 = arith.mulf %6, %8 : vector<16x32xf32>
    %cst_2 = arith.constant dense<0.000000e+00> : vector<16xf32>
    %10 = vector.multi_reduction <add>, %9, %cst_2 [1] : vector<16x32xf32> to vector<16xf32>
    %11 = vector.shape_cast %10 : vector<16xf32> to vector<16x1xf32>
    %cst_3 = arith.constant 3.200000e+01 : f32
    %12 = vector.broadcast %cst_3 : f32 to vector<16x1xf32>
    %13 = arith.divf %11, %12 : vector<16x1xf32>
    %cst_4 = arith.constant 9.99999996E-13 : f32
    %14 = vector.broadcast %cst_4 : f32 to vector<16x1xf32>
    %15 = arith.addf %13, %14 : vector<16x1xf32>
    %16 = math.rsqrt %15 : vector<16x1xf32>
    %17 = vector.broadcast %4 : vector<16x1xf32> to vector<16x32xf32>
    %18 = arith.subf %0, %17 : vector<16x32xf32>
    %19 = vector.broadcast %16 : vector<16x1xf32> to vector<16x32xf32>
    %20 = arith.mulf %18, %19 : vector<16x32xf32>
    %c0_5 = arith.constant 0 : index
    %c0_6 = arith.constant 0 : index
    %21 = vector.load %arg2[%c0_5, %c0_6] : memref<1x32xf32, #tpu.memory_space<vmem>>, vector<1x32xf32>
    %22 = vector.broadcast %21 : vector<1x32xf32> to vector<16x32xf32>
    %23 = arith.mulf %20, %22 : vector<16x32xf32>
    %c0_7 = arith.constant 0 : index
    %c0_8 = arith.constant 0 : index
    %24 = vector.load %arg3[%c0_7, %c0_8] : memref<1x32xf32, #tpu.memory_space<vmem>>, vector<1x32xf32>
    %25 = vector.broadcast %24 : vector<1x32xf32> to vector<16x32xf32>
    %26 = arith.addf %23, %25 : vector<16x32xf32>
    %27 = arith.truncf %26 : vector<16x32xf32> to vector<16x32xbf16>
    %c0_9 = arith.constant 0 : index
    %c0_10 = arith.constant 0 : index
    %28 = vector.load %arg4[%c0_9, %c0_10] : memref<16x32xbf16, #tpu.memory_space<vmem>>, vector<16x32xbf16>
    tpu.vector_store %arg4[%c0_9, %c0_10], %27 {strides = array<i32>} : memref<16x32xbf16, #tpu.memory_space<vmem>>, vector<16x32xbf16>,
    return
  }
  func.func @transform_0(%arg0: i32) -> (i32, i32) {
    %c0_i32 = arith.constant 0 : i32
    %c0_i32_0 = arith.constant 0 : i32
    return %arg0, %c0_i32 : i32, i32
  }
  func.func @transform_1(%arg0: i32) -> (i32, i32) {
    %c0_i32 = arith.constant 0 : i32
    %c0_i32_0 = arith.constant 0 : i32
    %c0_i32_1 = arith.constant 0 : i32
    return %c0_i32, %c0_i32_0 : i32, i32
  }
  func.func @transform_2(%arg0: i32) -> (i32, i32) {
    %c0_i32 = arith.constant 0 : i32
    %c0_i32_0 = arith.constant 0 : i32
    %c0_i32_1 = arith.constant 0 : i32
    return %c0_i32, %c0_i32_0 : i32, i32
  }
  func.func @transform_3(%arg0: i32) -> (i32, i32) {
    %c0_i32 = arith.constant 0 : i32
    %c0_i32_0 = arith.constant 0 : i32
    return %arg0, %c0_i32 : i32, i32
  }
}

module attributes {stable_mosaic.version = 11 : i64} {
  func.func @_dense_kernel(%arg0: i32, %arg1: i32, %arg2: i32, %arg3: memref<16x32xbf16, #tpu.memory_space<vmem>>, %arg4: memref<32x96xbf16, #tpu.memory_space<vmem>>, %arg5: memref<1x96xf32, #tpu.memory_space<vmem>>, %arg6: memref<16x96xbf16, #tpu.memory_space<vmem>>, %arg7: memref<16x96xf32, #tpu.memory_space<vmem>>) attributes {dimension_semantics = [#tpu.dimension_semantics<parallel>, #tpu.dimension_semantics<parallel>, #tpu.dimension_semantics<arbitrary>], iteration_bounds = array<i64: 1, 1, 1>, scalar_prefetch = 0 : i64, scratch_operands = 1 : i64, tpu.core_type = #tpu.core_type<tc>, window_params = [{transform_indices = @transform_0, window_bounds = array<i64: 16, 32>}, {transform_indices = @transform_1, window_bounds = array<i64: 32, 96>}, {transform_indices = @transform_2, window_bounds = array<i64: 1, 96>}, {transform_indices = @transform_3, window_bounds = array<i64: 16, 96>}]} {
    %c0_i32 = arith.constant 0 : i32
    %0 = arith.cmpi eq, %arg2, %c0_i32 : i32
    %1 = arith.extui %0 : i1 to i32
    %c0_i32_0 = arith.constant 0 : i32
    %2 = arith.cmpi ne, %1, %c0_i32_0 : i32
    scf.if %2 {
      %cst_10 = arith.constant 0.000000e+00 : f32
      %12 = vector.broadcast %cst_10 : f32 to vector<16x96xf32>
      %c0_11 = arith.constant 0 : index
      %c0_12 = arith.constant 0 : index
      %13 = vector.load %arg7[%c0_11, %c0_12] : memref<16x96xf32, #tpu.memory_space<vmem>>, vector<16x96xf32>
      tpu.vector_store %arg7[%c0_11, %c0_12], %12 {strides = array<i32>} : memref<16x96xf32, #tpu.memory_space<vmem>>, vector<16x96xf32>,
    } else {
    }
    %c0 = arith.constant 0 : index
    %c0_1 = arith.constant 0 : index
    %3 = vector.load %arg7[%c0, %c0_1] : memref<16x96xf32, #tpu.memory_space<vmem>>, vector<16x96xf32>
    %c0_2 = arith.constant 0 : index
    %c0_3 = arith.constant 0 : index
    %4 = vector.load %arg3[%c0_2, %c0_3] : memref<16x32xbf16, #tpu.memory_space<vmem>>, vector<16x32xbf16>
    %c0_4 = arith.constant 0 : index
    %c0_5 = arith.constant 0 : index
    %5 = vector.load %arg4[%c0_4, %c0_5] : memref<32x96xbf16, #tpu.memory_space<vmem>>, vector<32x96xbf16>
    %cst = arith.constant dense<0.000000e+00> : vector<16x96xf32>
    %6 = tpu.matmul %4, %5, %cst {dimension_numbers = #tpu.dot_dimension_numbers<[1], [0], [0], [1], [0, 0, 1, 1], [], []>} : vector<16x32xbf16>, vector<32x96xbf16>, vector<16x96xf32> -> vector<16x96xf32>
    %7 = arith.addf %3, %6 : vector<16x96xf32>
    %c0_6 = arith.constant 0 : index
    %c0_7 = arith.constant 0 : index
    %8 = vector.load %arg7[%c0_6, %c0_7] : memref<16x96xf32, #tpu.memory_space<vmem>>, vector<16x96xf32>
    tpu.vector_store %arg7[%c0_6, %c0_7], %7 {strides = array<i32>} : memref<16x96xf32, #tpu.memory_space<vmem>>, vector<16x96xf32>,
    %c0_i32_8 = arith.constant 0 : i32
    %9 = arith.cmpi eq, %arg2, %c0_i32_8 : i32
    %10 = arith.extui %9 : i1 to i32
    %c0_i32_9 = arith.constant 0 : i32
    %11 = arith.cmpi ne, %10, %c0_i32_9 : i32
    scf.if %11 {
      %c0_10 = arith.constant 0 : index
      %c0_11 = arith.constant 0 : index
      %12 = vector.load %arg7[%c0_10, %c0_11] : memref<16x96xf32, #tpu.memory_space<vmem>>, vector<16x96xf32>
      %c0_12 = arith.constant 0 : index
      %c0_13 = arith.constant 0 : index
      %13 = vector.load %arg5[%c0_12, %c0_13] : memref<1x96xf32, #tpu.memory_space<vmem>>, vector<1x96xf32>
      %14 = vector.broadcast %13 : vector<1x96xf32> to vector<16x96xf32>
      %15 = arith.addf %12, %14 : vector<16x96xf32>
      %16 = arith.truncf %15 : vector<16x96xf32> to vector<16x96xbf16>
      %c0_14 = arith.constant 0 : index
      %c0_15 = arith.constant 0 : index
      %17 = vector.load %arg6[%c0_14, %c0_15] : memref<16x96xbf16, #tpu.memory_space<vmem>>, vector<16x96xbf16>
      tpu.vector_store %arg6[%c0_14, %c0_15], %16 {strides = array<i32>} : memref<16x96xbf16, #tpu.memory_space<vmem>>, vector<16x96xbf16>,
    } else {
    }
    return
  }
  func.func @transform_0(%arg0: i32, %arg1: i32, %arg2: i32) -> (i32, i32) {
    %c0_i32 = arith.constant 0 : i32
    return %arg0, %arg2 : i32, i32
  }
  func.func @transform_1(%arg0: i32, %arg1: i32, %arg2: i32) -> (i32, i32) {
    %c0_i32 = arith.constant 0 : i32
    return %arg2, %arg1 : i32, i32
  }
  func.func @transform_2(%arg0: i32, %arg1: i32, %arg2: i32) -> (i32, i32) {
    %c0_i32 = arith.constant 0 : i32
    %c0_i32_0 = arith.constant 0 : i32
    return %c0_i32, %arg1 : i32, i32
  }
  func.func @transform_3(%arg0: i32, %arg1: i32, %arg2: i32) -> (i32, i32) {
    %c0_i32 = arith.constant 0 : i32
    return %arg0, %arg1 : i32, i32
  }
}

module attributes {stable_mosaic.version = 11 : i64} {
  func.func @_attn_kernel(%arg0: i32, %arg1: i32, %arg2: memref<1x8x96xbf16, #tpu.memory_space<vmem>>, %arg3: memref<1x1x8xf32, #tpu.memory_space<vmem>>, %arg4: memref<1x8x32xbf16, #tpu.memory_space<vmem>>) attributes {dimension_semantics = [#tpu.dimension_semantics<parallel>, #tpu.dimension_semantics<parallel>], iteration_bounds = array<i64: 2, 1>, scalar_prefetch = 0 : i64, scratch_operands = 0 : i64, tpu.core_type = #tpu.core_type<tc>, window_params = [{transform_indices = @transform_0, window_bounds = array<i64: 1, 8, 96>}, {transform_indices = @transform_1, window_bounds = array<i64: 1, 1, 8>}, {transform_indices = @transform_2, window_bounds = array<i64: 1, 8, 32>}]} {
    %c8_i32 = arith.constant 8 : i32
    %0 = arith.muli %arg1, %c8_i32 : i32
    %1 = tpu.assume_multiple %0, 8 : i32
    %c0 = arith.constant 0 : index
    %c0_0 = arith.constant 0 : index
    %c0_1 = arith.constant 0 : index
    %2 = vector.load %arg3[%c0, %c0_0, %c0_1] : memref<1x1x8xf32, #tpu.memory_space<vmem>>, vector<1x1x8xf32>
    %3 = vector.shape_cast %2 : vector<1x1x8xf32> to vector<1x8xf32>
    %c0_2 = arith.constant 0 : index
    %4 = arith.index_cast %1 : i32 to index
    %c0_3 = arith.constant 0 : index
    %5 = vector.load %arg2[%c0_2, %4, %c0_3] : memref<1x8x96xbf16, #tpu.memory_space<vmem>>, vector<1x8x8xbf16>
    %6 = vector.shape_cast %5 : vector<1x8x8xbf16> to vector<8x8xbf16>
    %c0_4 = arith.constant 0 : index
    %c0_5 = arith.constant 0 : index
    %c32 = arith.constant 32 : index
    %7 = vector.load %arg2[%c0_4, %c0_5, %c32] : memref<1x8x96xbf16, #tpu.memory_space<vmem>>, vector<1x8x8xbf16>
    %8 = vector.shape_cast %7 : vector<1x8x8xbf16> to vector<8x8xbf16>
    %c0_6 = arith.constant 0 : index
    %c0_7 = arith.constant 0 : index
    %c64 = arith.constant 64 : index
    %9 = vector.load %arg2[%c0_6, %c0_7, %c64] : memref<1x8x96xbf16, #tpu.memory_space<vmem>>, vector<1x8x8xbf16>
    %10 = vector.shape_cast %9 : vector<1x8x8xbf16> to vector<8x8xbf16>
    "tpu.trace_start"() <{level = 10 : i32, message = "qd,kd->qk"}> : () -> ()
    %cst = arith.constant dense<0.000000e+00> : vector<8x8xf32>
    %11 = tpu.matmul %6, %8, %cst {dimension_numbers = #tpu.dot_dimension_numbers<[1], [1], [0], [0], [0, 0, 1, 0], [], []>} : vector<8x8xbf16>, vector<8x8xbf16>, vector<8x8xf32> -> vector<8x8xf32>
    "tpu.trace_stop"() : () -> ()
    %12 = vector.broadcast %3 : vector<1x8xf32> to vector<8x8xf32>
    %13 = arith.addf %11, %12 : vector<8x8xf32>
    %cst_8 = arith.constant dense<0xFF800000> : vector<8xf32>
    %14 = vector.multi_reduction <maximumf>, %13, %cst_8 [1] : vector<8x8xf32> to vector<8xf32>
    %15 = vector.shape_cast %14 : vector<8xf32> to vector<8x1xf32>
    %16 = vector.broadcast %15 : vector<8x1xf32> to vector<8x8xf32>
    %17 = arith.subf %13, %16 : vector<8x8xf32>
    %18 = math.exp %17 : vector<8x8xf32>
    %cst_9 = arith.constant dense<0.000000e+00> : vector<8xf32>
    %19 = vector.multi_reduction <add>, %18, %cst_9 [1] : vector<8x8xf32> to vector<8xf32>
    %20 = vector.shape_cast %19 : vector<8xf32> to vector<8x1xf32>
    %21 = tpu.reciprocal %20 {approx = true} : vector<8x1xf32> -> vector<8x1xf32>
    %22 = vector.broadcast %21 : vector<8x1xf32> to vector<8x8xf32>
    %23 = arith.mulf %18, %22 : vector<8x8xf32>
    %24 = arith.truncf %23 : vector<8x8xf32> to vector<8x8xbf16>
    %cst_10 = arith.constant dense<0.000000e+00> : vector<8x8xf32>
    %25 = tpu.matmul %24, %10, %cst_10 {dimension_numbers = #tpu.dot_dimension_numbers<[1], [0], [0], [1], [0, 0, 1, 1], [], []>} : vector<8x8xbf16>, vector<8x8xbf16>, vector<8x8xf32> -> vector<8x8xf32>
    %26 = arith.truncf %25 : vector<8x8xf32> to vector<8x8xbf16>
    %c0_11 = arith.constant 0 : index
    %c0_12 = arith.constant 0 : index
    %c0_13 = arith.constant 0 : index
    %27 = vector.load %arg4[%c0_11, %c0_12, %c0_13] : memref<1x8x32xbf16, #tpu.memory_space<vmem>>, vector<1x8x8xbf16>
    %28 = vector.shape_cast %27 : vector<1x8x8xbf16> to vector<8x8xbf16>
    %29 = vector.shape_cast %26 : vector<8x8xbf16> to vector<1x8x8xbf16>
    tpu.vector_store %arg4[%c0_11, %c0_12, %c0_13], %29 {strides = array<i32>} : memref<1x8x32xbf16, #tpu.memory_space<vmem>>, vector<1x8x8xbf16>,
    %c0_14 = arith.constant 0 : index
    %30 = arith.index_cast %1 : i32 to index
    %c8 = arith.constant 8 : index
    %31 = vector.load %arg2[%c0_14, %30, %c8] : memref<1x8x96xbf16, #tpu.memory_space<vmem>>, vector<1x8x8xbf16>
    %32 = vector.shape_cast %31 : vector<1x8x8xbf16> to vector<8x8xbf16>
    %c0_15 = arith.constant 0 : index
    %c0_16 = arith.constant 0 : index
    %c40 = arith.constant 40 : index
    %33 = vector.load %arg2[%c0_15, %c0_16, %c40] : memref<1x8x96xbf16, #tpu.memory_space<vmem>>, vector<1x8x8xbf16>
    %34 = vector.shape_cast %33 : vector<1x8x8xbf16> to vector<8x8xbf16>
    %c0_17 = arith.constant 0 : index
    %c0_18 = arith.constant 0 : index
    %c72 = arith.constant 72 : index
    %35 = vector.load %arg2[%c0_17, %c0_18, %c72] : memref<1x8x96xbf16, #tpu.memory_space<vmem>>, vector<1x8x8xbf16>
    %36 = vector.shape_cast %35 : vector<1x8x8xbf16> to vector<8x8xbf16>
    "tpu.trace_start"() <{level = 10 : i32, message = "qd,kd->qk"}> : () -> ()
    %cst_19 = arith.constant dense<0.000000e+00> : vector<8x8xf32>
    %37 = tpu.matmul %32, %34, %cst_19 {dimension_numbers = #tpu.dot_dimension_numbers<[1], [1], [0], [0], [0, 0, 1, 0], [], []>} : vector<8x8xbf16>, vector<8x8xbf16>, vector<8x8xf32> -> vector<8x8xf32>
    "tpu.trace_stop"() : () -> ()
    %38 = vector.broadcast %3 : vector<1x8xf32> to vector<8x8xf32>
    %39 = arith.addf %37, %38 : vector<8x8xf32>
    %cst_20 = arith.constant dense<0xFF800000> : vector<8xf32>
    %40 = vector.multi_reduction <maximumf>, %39, %cst_20 [1] : vector<8x8xf32> to vector<8xf32>
    %41 = vector.shape_cast %40 : vector<8xf32> to vector<8x1xf32>
    %42 = vector.broadcast %41 : vector<8x1xf32> to vector<8x8xf32>
    %43 = arith.subf %39, %42 : vector<8x8xf32>
    %44 = math.exp %43 : vector<8x8xf32>
    %cst_21 = arith.constant dense<0.000000e+00> : vector<8xf32>
    %45 = vector.multi_reduction <add>, %44, %cst_21 [1] : vector<8x8xf32> to vector<8xf32>
    %46 = vector.shape_cast %45 : vector<8xf32> to vector<8x1xf32>
    %47 = tpu.reciprocal %46 {approx = true} : vector<8x1xf32> -> vector<8x1xf32>
    %48 = vector.broadcast %47 : vector<8x1xf32> to vector<8x8xf32>
    %49 = arith.mulf %44, %48 : vector<8x8xf32>
    %50 = arith.truncf %49 : vector<8x8xf32> to vector<8x8xbf16>
    %cst_22 = arith.constant dense<0.000000e+00> : vector<8x8xf32>
    %51 = tpu.matmul %50, %36, %cst_22 {dimension_numbers = #tpu.dot_dimension_numbers<[1], [0], [0], [1], [0, 0, 1, 1], [], []>} : vector<8x8xbf16>, vector<8x8xbf16>, vector<8x8xf32> -> vector<8x8xf32>
    %52 = arith.truncf %51 : vector<8x8xf32> to vector<8x8xbf16>
    %c0_23 = arith.constant 0 : index
    %c0_24 = arith.constant 0 : index
    %c8_25 = arith.constant 8 : index
    %53 = vector.load %arg4[%c0_23, %c0_24, %c8_25] : memref<1x8x32xbf16, #tpu.memory_space<vmem>>, vector<1x8x8xbf16>
    %54 = vector.shape_cast %53 : vector<1x8x8xbf16> to vector<8x8xbf16>
    %55 = vector.shape_cast %52 : vector<8x8xbf16> to vector<1x8x8xbf16>
    tpu.vector_store %arg4[%c0_23, %c0_24, %c8_25], %55 {strides = array<i32>} : memref<1x8x32xbf16, #tpu.memory_space<vmem>>, vector<1x8x8xbf16>,
    %c0_26 = arith.constant 0 : index
    %56 = arith.index_cast %1 : i32 to index
    %c16 = arith.constant 16 : index
    %57 = vector.load %arg2[%c0_26, %56, %c16] : memref<1x8x96xbf16, #tpu.memory_space<vmem>>, vector<1x8x8xbf16>
    %58 = vector.shape_cast %57 : vector<1x8x8xbf16> to vector<8x8xbf16>
    %c0_27 = arith.constant 0 : index
    %c0_28 = arith.constant 0 : index
    %c48 = arith.constant 48 : index
    %59 = vector.load %arg2[%c0_27, %c0_28, %c48] : memref<1x8x96xbf16, #tpu.memory_space<vmem>>, vector<1x8x8xbf16>
    %60 = vector.shape_cast %59 : vector<1x8x8xbf16> to vector<8x8xbf16>
    %c0_29 = arith.constant 0 : index
    %c0_30 = arith.constant 0 : index
    %c80 = arith.constant 80 : index
    %61 = vector.load %arg2[%c0_29, %c0_30, %c80] : memref<1x8x96xbf16, #tpu.memory_space<vmem>>, vector<1x8x8xbf16>
    %62 = vector.shape_cast %61 : vector<1x8x8xbf16> to vector<8x8xbf16>
    "tpu.trace_start"() <{level = 10 : i32, message = "qd,kd->qk"}> : () -> ()
    %cst_31 = arith.constant dense<0.000000e+00> : vector<8x8xf32>
    %63 = tpu.matmul %58, %60, %cst_31 {dimension_numbers = #tpu.dot_dimension_numbers<[1], [1], [0], [0], [0, 0, 1, 0], [], []>} : vector<8x8xbf16>, vector<8x8xbf16>, vector<8x8xf32> -> vector<8x8xf32>
    "tpu.trace_stop"() : () -> ()
    %64 = vector.broadcast %3 : vector<1x8xf32> to vector<8x8xf32>
    %65 = arith.addf %63, %64 : vector<8x8xf32>
    %cst_32 = arith.constant dense<0xFF800000> : vector<8xf32>
    %66 = vector.multi_reduction <maximumf>, %65, %cst_32 [1] : vector<8x8xf32> to vector<8xf32>
    %67 = vector.shape_cast %66 : vector<8xf32> to vector<8x1xf32>
    %68 = vector.broadcast %67 : vector<8x1xf32> to vector<8x8xf32>
    %69 = arith.subf %65, %68 : vector<8x8xf32>
    %70 = math.exp %69 : vector<8x8xf32>
    %cst_33 = arith.constant dense<0.000000e+00> : vector<8xf32>
    %71 = vector.multi_reduction <add>, %70, %cst_33 [1] : vector<8x8xf32> to vector<8xf32>
    %72 = vector.shape_cast %71 : vector<8xf32> to vector<8x1xf32>
    %73 = tpu.reciprocal %72 {approx = true} : vector<8x1xf32> -> vector<8x1xf32>
    %74 = vector.broadcast %73 : vector<8x1xf32> to vector<8x8xf32>
    %75 = arith.mulf %70, %74 : vector<8x8xf32>
    %76 = arith.truncf %75 : vector<8x8xf32> to vector<8x8xbf16>
    %cst_34 = arith.constant dense<0.000000e+00> : vector<8x8xf32>
    %77 = tpu.matmul %76, %62, %cst_34 {dimension_numbers = #tpu.dot_dimension_numbers<[1], [0], [0], [1], [0, 0, 1, 1], [], []>} : vector<8x8xbf16>, vector<8x8xbf16>, vector<8x8xf32> -> vector<8x8xf32>
    %78 = arith.truncf %77 : vector<8x8xf32> to vector<8x8xbf16>
    %c0_35 = arith.constant 0 : index
    %c0_36 = arith.constant 0 : index
    %c16_37 = arith.constant 16 : index
    %79 = vector.load %arg4[%c0_35, %c0_36, %c16_37] : memref<1x8x32xbf16, #tpu.memory_space<vmem>>, vector<1x8x8xbf16>
    %80 = vector.shape_cast %79 : vector<1x8x8xbf16> to vector<8x8xbf16>
    %81 = vector.shape_cast %78 : vector<8x8xbf16> to vector<1x8x8xbf16>
    tpu.vector_store %arg4[%c0_35, %c0_36, %c16_37], %81 {strides = array<i32>} : memref<1x8x32xbf16, #tpu.memory_space<vmem>>, vector<1x8x8xbf16>,
    %c0_38 = arith.constant 0 : index
    %82 = arith.index_cast %1 : i32 to index
    %c24 = arith.constant 24 : index
    %83 = vector.load %arg2[%c0_38, %82, %c24] : memref<1x8x96xbf16, #tpu.memory_space<vmem>>, vector<1x8x8xbf16>
    %84 = vector.shape_cast %83 : vector<1x8x8xbf16> to vector<8x8xbf16>
    %c0_39 = arith.constant 0 : index
    %c0_40 = arith.constant 0 : index
    %c56 = arith.constant 56 : index
    %85 = vector.load %arg2[%c0_39, %c0_40, %c56] : memref<1x8x96xbf16, #tpu.memory_space<vmem>>, vector<1x8x8xbf16>
    %86 = vector.shape_cast %85 : vector<1x8x8xbf16> to vector<8x8xbf16>
    %c0_41 = arith.constant 0 : index
    %c0_42 = arith.constant 0 : index
    %c88 = arith.constant 88 : index
    %87 = vector.load %arg2[%c0_41, %c0_42, %c88] : memref<1x8x96xbf16, #tpu.memory_space<vmem>>, vector<1x8x8xbf16>
    %88 = vector.shape_cast %87 : vector<1x8x8xbf16> to vector<8x8xbf16>
    "tpu.trace_start"() <{level = 10 : i32, message = "qd,kd->qk"}> : () -> ()
    %cst_43 = arith.constant dense<0.000000e+00> : vector<8x8xf32>
    %89 = tpu.matmul %84, %86, %cst_43 {dimension_numbers = #tpu.dot_dimension_numbers<[1], [1], [0], [0], [0, 0, 1, 0], [], []>} : vector<8x8xbf16>, vector<8x8xbf16>, vector<8x8xf32> -> vector<8x8xf32>
    "tpu.trace_stop"() : () -> ()
    %90 = vector.broadcast %3 : vector<1x8xf32> to vector<8x8xf32>
    %91 = arith.addf %89, %90 : vector<8x8xf32>
    %cst_44 = arith.constant dense<0xFF800000> : vector<8xf32>
    %92 = vector.multi_reduction <maximumf>, %91, %cst_44 [1] : vector<8x8xf32> to vector<8xf32>
    %93 = vector.shape_cast %92 : vector<8xf32> to vector<8x1xf32>
    %94 = vector.broadcast %93 : vector<8x1xf32> to vector<8x8xf32>
    %95 = arith.subf %91, %94 : vector<8x8xf32>
    %96 = math.exp %95 : vector<8x8xf32>
    %cst_45 = arith.constant dense<0.000000e+00> : vector<8xf32>
    %97 = vector.multi_reduction <add>, %96, %cst_45 [1] : vector<8x8xf32> to vector<8xf32>
    %98 = vector.shape_cast %97 : vector<8xf32> to vector<8x1xf32>
    %99 = tpu.reciprocal %98 {approx = true} : vector<8x1xf32> -> vector<8x1xf32>
    %100 = vector.broadcast %99 : vector<8x1xf32> to vector<8x8xf32>
    %101 = arith.mulf %96, %100 : vector<8x8xf32>
    %102 = arith.truncf %101 : vector<8x8xf32> to vector<8x8xbf16>
    %cst_46 = arith.constant dense<0.000000e+00> : vector<8x8xf32>
    %103 = tpu.matmul %102, %88, %cst_46 {dimension_numbers = #tpu.dot_dimension_numbers<[1], [0], [0], [1], [0, 0, 1, 1], [], []>} : vector<8x8xbf16>, vector<8x8xbf16>, vector<8x8xf32> -> vector<8x8xf32>
    %104 = arith.truncf %103 : vector<8x8xf32> to vector<8x8xbf16>
    %c0_47 = arith.constant 0 : index
    %c0_48 = arith.constant 0 : index
    %c24_49 = arith.constant 24 : index
    %105 = vector.load %arg4[%c0_47, %c0_48, %c24_49] : memref<1x8x32xbf16, #tpu.memory_space<vmem>>, vector<1x8x8xbf16>
    %106 = vector.shape_cast %105 : vector<1x8x8xbf16> to vector<8x8xbf16>
    %107 = vector.shape_cast %104 : vector<8x8xbf16> to vector<1x8x8xbf16>
    tpu.vector_store %arg4[%c0_47, %c0_48, %c24_49], %107 {strides = array<i32>} : memref<1x8x32xbf16, #tpu.memory_space<vmem>>, vector<1x8x8xbf16>,
    return
  }
  func.func @transform_0(%arg0: i32, %arg1: i32) -> (i32, i32, i32) {
    %c0_i32 = arith.constant 0 : i32
    %c0_i32_0 = arith.constant 0 : i32
    %c0_i32_1 = arith.constant 0 : i32
    return %arg0, %c0_i32, %c0_i32_0 : i32, i32, i32
  }
  func.func @transform_1(%arg0: i32, %arg1: i32) -> (i32, i32, i32) {
    %c0_i32 = arith.constant 0 : i32
    %c0_i32_0 = arith.constant 0 : i32
    %c0_i32_1 = arith.constant 0 : i32
    return %arg0, %c0_i32, %c0_i32_0 : i32, i32, i32
  }
  func.func @transform_2(%arg0: i32, %arg1: i32) -> (i32, i32, i32) {
    %c0_i32 = arith.constant 0 : i32
    %c0_i32_0 = arith.constant 0 : i32
    return %arg0, %arg1, %c0_i32 : i32, i32, i32
  }
}

module attributes {stable_mosaic.version = 11 : i64} {
  func.func @_dense_add_ln_kernel(%arg0: i32, %arg1: i32, %arg2: memref<16x32xbf16, #tpu.memory_space<vmem>>, %arg3: memref<32x32xbf16, #tpu.memory_space<vmem>>, %arg4: memref<1x32xf32, #tpu.memory_space<vmem>>, %arg5: memref<16x32xbf16, #tpu.memory_space<vmem>>, %arg6: memref<1x32xf32, #tpu.memory_space<vmem>>, %arg7: memref<1x32xf32, #tpu.memory_space<vmem>>, %arg8: memref<16x32xbf16, #tpu.memory_space<vmem>>, %arg9: memref<16x32xf32, #tpu.memory_space<vmem>>) attributes {dimension_semantics = [#tpu.dimension_semantics<parallel>, #tpu.dimension_semantics<arbitrary>], iteration_bounds = array<i64: 1, 1>, scalar_prefetch = 0 : i64, scratch_operands = 1 : i64, tpu.core_type = #tpu.core_type<tc>, window_params = [{transform_indices = @transform_0, window_bounds = array<i64: 16, 32>}, {transform_indices = @transform_1, window_bounds = array<i64: 32, 32>}, {pipeline_mode = #tpu.pipeline_mode<synchronous>, transform_indices = @transform_2, window_bounds = array<i64: 1, 32>}, {transform_indices = @transform_3, window_bounds = array<i64: 16, 32>}, {pipeline_mode = #tpu.pipeline_mode<synchronous>, transform_indices = @transform_4, window_bounds = array<i64: 1, 32>}, {pipeline_mode = #tpu.pipeline_mode<synchronous>, transform_indices = @transform_5, window_bounds = array<i64: 1, 32>}, {transform_indices = @transform_6, window_bounds = array<i64: 16, 32>}]} {
    %c0_i32 = arith.constant 0 : i32
    %0 = arith.cmpi eq, %arg1, %c0_i32 : i32
    %1 = arith.extui %0 : i1 to i32
    %c0_i32_0 = arith.constant 0 : i32
    %2 = arith.cmpi ne, %1, %c0_i32_0 : i32
    scf.if %2 {
      %cst_10 = arith.constant 0.000000e+00 : f32
      %12 = vector.broadcast %cst_10 : f32 to vector<16x32xf32>
      %c0_11 = arith.constant 0 : index
      %c0_12 = arith.constant 0 : index
      %13 = vector.load %arg9[%c0_11, %c0_12] : memref<16x32xf32, #tpu.memory_space<vmem>>, vector<16x32xf32>
      tpu.vector_store %arg9[%c0_11, %c0_12], %12 {strides = array<i32>} : memref<16x32xf32, #tpu.memory_space<vmem>>, vector<16x32xf32>,
    } else {
    }
    %c0 = arith.constant 0 : index
    %c0_1 = arith.constant 0 : index
    %3 = vector.load %arg9[%c0, %c0_1] : memref<16x32xf32, #tpu.memory_space<vmem>>, vector<16x32xf32>
    %c0_2 = arith.constant 0 : index
    %c0_3 = arith.constant 0 : index
    %4 = vector.load %arg2[%c0_2, %c0_3] : memref<16x32xbf16, #tpu.memory_space<vmem>>, vector<16x32xbf16>
    %c0_4 = arith.constant 0 : index
    %c0_5 = arith.constant 0 : index
    %5 = vector.load %arg3[%c0_4, %c0_5] : memref<32x32xbf16, #tpu.memory_space<vmem>>, vector<32x32xbf16>
    %cst = arith.constant dense<0.000000e+00> : vector<16x32xf32>
    %6 = tpu.matmul %4, %5, %cst {dimension_numbers = #tpu.dot_dimension_numbers<[1], [0], [0], [1], [0, 0, 1, 1], [], []>} : vector<16x32xbf16>, vector<32x32xbf16>, vector<16x32xf32> -> vector<16x32xf32>
    %7 = arith.addf %3, %6 : vector<16x32xf32>
    %c0_6 = arith.constant 0 : index
    %c0_7 = arith.constant 0 : index
    %8 = vector.load %arg9[%c0_6, %c0_7] : memref<16x32xf32, #tpu.memory_space<vmem>>, vector<16x32xf32>
    tpu.vector_store %arg9[%c0_6, %c0_7], %7 {strides = array<i32>} : memref<16x32xf32, #tpu.memory_space<vmem>>, vector<16x32xf32>,
    %c0_i32_8 = arith.constant 0 : i32
    %9 = arith.cmpi eq, %arg1, %c0_i32_8 : i32
    %10 = arith.extui %9 : i1 to i32
    %c0_i32_9 = arith.constant 0 : i32
    %11 = arith.cmpi ne, %10, %c0_i32_9 : i32
    scf.if %11 {
      %c0_10 = arith.constant 0 : index
      %c0_11 = arith.constant 0 : index
      %12 = vector.load %arg9[%c0_10, %c0_11] : memref<16x32xf32, #tpu.memory_space<vmem>>, vector<16x32xf32>
      %c0_12 = arith.constant 0 : index
      %c0_13 = arith.constant 0 : index
      %13 = vector.load %arg4[%c0_12, %c0_13] : memref<1x32xf32, #tpu.memory_space<vmem>>, vector<1x32xf32>
      %14 = vector.broadcast %13 : vector<1x32xf32> to vector<16x32xf32>
      %15 = arith.addf %12, %14 : vector<16x32xf32>
      %c0_14 = arith.constant 0 : index
      %c0_15 = arith.constant 0 : index
      %16 = vector.load %arg5[%c0_14, %c0_15] : memref<16x32xbf16, #tpu.memory_space<vmem>>, vector<16x32xbf16>
      %17 = arith.extf %16 : vector<16x32xbf16> to vector<16x32xf32>
      %18 = arith.addf %15, %17 : vector<16x32xf32>
      %cst_16 = arith.constant dense<0.000000e+00> : vector<16xf32>
      %19 = vector.multi_reduction <add>, %18, %cst_16 [1] : vector<16x32xf32> to vector<16xf32>
      %20 = vector.shape_cast %19 : vector<16xf32> to vector<16x1xf32>
      %cst_17 = arith.constant 3.200000e+01 : f32
      %21 = vector.broadcast %cst_17 : f32 to vector<16x1xf32>
      %22 = arith.divf %20, %21 : vector<16x1xf32>
      %23 = vector.broadcast %22 : vector<16x1xf32> to vector<16x32xf32>
      %24 = arith.subf %18, %23 : vector<16x32xf32>
      %25 = vector.broadcast %22 : vector<16x1xf32> to vector<16x32xf32>
      %26 = arith.subf %18, %25 : vector<16x32xf32>
      %27 = arith.mulf %24, %26 : vector<16x32xf32>
      %cst_18 = arith.constant dense<0.000000e+00> : vector<16xf32>
      %28 = vector.multi_reduction <add>, %27, %cst_18 [1] : vector<16x32xf32> to vector<16xf32>
      %29 = vector.shape_cast %28 : vector<16xf32> to vector<16x1xf32>
      %cst_19 = arith.constant 3.200000e+01 : f32
      %30 = vector.broadcast %cst_19 : f32 to vector<16x1xf32>
      %31 = arith.divf %29, %30 : vector<16x1xf32>
      %cst_20 = arith.constant 9.99999996E-13 : f32
      %32 = vector.broadcast %cst_20 : f32 to vector<16x1xf32>
      %33 = arith.addf %31, %32 : vector<16x1xf32>
      %34 = math.rsqrt %33 : vector<16x1xf32>
      %35 = vector.broadcast %22 : vector<16x1xf32> to vector<16x32xf32>
      %36 = arith.subf %18, %35 : vector<16x32xf32>
      %37 = vector.broadcast %34 : vector<16x1xf32> to vector<16x32xf32>
      %38 = arith.mulf %36, %37 : vector<16x32xf32>
      %c0_21 = arith.constant 0 : index
      %c0_22 = arith.constant 0 : index
      %39 = vector.load %arg6[%c0_21, %c0_22] : memref<1x32xf32, #tpu.memory_space<vmem>>, vector<1x32xf32>
      %40 = vector.broadcast %39 : vector<1x32xf32> to vector<16x32xf32>
      %41 = arith.mulf %38, %40 : vector<16x32xf32>
      %c0_23 = arith.constant 0 : index
      %c0_24 = arith.constant 0 : index
      %42 = vector.load %arg7[%c0_23, %c0_24] : memref<1x32xf32, #tpu.memory_space<vmem>>, vector<1x32xf32>
      %43 = vector.broadcast %42 : vector<1x32xf32> to vector<16x32xf32>
      %44 = arith.addf %41, %43 : vector<16x32xf32>
      %45 = arith.truncf %44 : vector<16x32xf32> to vector<16x32xbf16>
      %c0_25 = arith.constant 0 : index
      %c0_26 = arith.constant 0 : index
      %46 = vector.load %arg8[%c0_25, %c0_26] : memref<16x32xbf16, #tpu.memory_space<vmem>>, vector<16x32xbf16>
      tpu.vector_store %arg8[%c0_25, %c0_26], %45 {strides = array<i32>} : memref<16x32xbf16, #tpu.memory_space<vmem>>, vector<16x32xbf16>,
    } else {
    }
    return
  }
  func.func @transform_0(%arg0: i32, %arg1: i32) -> (i32, i32) {
    %c0_i32 = arith.constant 0 : i32
    return %arg0, %arg1 : i32, i32
  }
  func.func @transform_1(%arg0: i32, %arg1: i32) -> (i32, i32) {
    %c0_i32 = arith.constant 0 : i32
    %c0_i32_0 = arith.constant 0 : i32
    return %arg1, %c0_i32 : i32, i32
  }
  func.func @transform_2(%arg0: i32, %arg1: i32) -> (i32, i32) {
    %c0_i32 = arith.constant 0 : i32
    %c0_i32_0 = arith.constant 0 : i32
    %c0_i32_1 = arith.constant 0 : i32
    return %c0_i32, %c0_i32_0 : i32, i32
  }
  func.func @transform_3(%arg0: i32, %arg1: i32) -> (i32, i32) {
    %c0_i32 = arith.constant 0 : i32
    %c0_i32_0 = arith.constant 0 : i32
    return %arg0, %c0_i32 : i32, i32
  }
  func.func @transform_4(%arg0: i32, %arg1: i32) -> (i32, i32) {
    %c0_i32 = arith.constant 0 : i32
    %c0_i32_0 = arith.constant 0 : i32
    %c0_i32_1 = arith.constant 0 : i32
    return %c0_i32, %c0_i32_0 : i32, i32
  }
  func.func @transform_5(%arg0: i32, %arg1: i32) -> (i32, i32) {
    %c0_i32 = arith.constant 0 : i32
    %c0_i32_0 = arith.constant 0 : i32
    %c0_i32_1 = arith.constant 0 : i32
    return %c0_i32, %c0_i32_0 : i32, i32
  }
  func.func @transform_6(%arg0: i32, %arg1: i32) -> (i32, i32) {
    %c0_i32 = arith.constant 0 : i32
    %c0_i32_0 = arith.constant 0 : i32
    return %arg0, %c0_i32 : i32, i32
  }
}

module attributes {stable_mosaic.version = 11 : i64} {
  func.func @_dense_kernel(%arg0: i32, %arg1: i32, %arg2: i32, %arg3: memref<16x32xbf16, #tpu.memory_space<vmem>>, %arg4: memref<32x64xbf16, #tpu.memory_space<vmem>>, %arg5: memref<1x64xf32, #tpu.memory_space<vmem>>, %arg6: memref<16x64xbf16, #tpu.memory_space<vmem>>, %arg7: memref<16x64xf32, #tpu.memory_space<vmem>>) attributes {dimension_semantics = [#tpu.dimension_semantics<parallel>, #tpu.dimension_semantics<parallel>, #tpu.dimension_semantics<arbitrary>], iteration_bounds = array<i64: 1, 1, 1>, scalar_prefetch = 0 : i64, scratch_operands = 1 : i64, tpu.core_type = #tpu.core_type<tc>, window_params = [{transform_indices = @transform_0, window_bounds = array<i64: 16, 32>}, {transform_indices = @transform_1, window_bounds = array<i64: 32, 64>}, {transform_indices = @transform_2, window_bounds = array<i64: 1, 64>}, {transform_indices = @transform_3, window_bounds = array<i64: 16, 64>}]} {
    %c0_i32 = arith.constant 0 : i32
    %0 = arith.cmpi eq, %arg2, %c0_i32 : i32
    %1 = arith.extui %0 : i1 to i32
    %c0_i32_0 = arith.constant 0 : i32
    %2 = arith.cmpi ne, %1, %c0_i32_0 : i32
    scf.if %2 {
      %cst_10 = arith.constant 0.000000e+00 : f32
      %12 = vector.broadcast %cst_10 : f32 to vector<16x64xf32>
      %c0_11 = arith.constant 0 : index
      %c0_12 = arith.constant 0 : index
      %13 = vector.load %arg7[%c0_11, %c0_12] : memref<16x64xf32, #tpu.memory_space<vmem>>, vector<16x64xf32>
      tpu.vector_store %arg7[%c0_11, %c0_12], %12 {strides = array<i32>} : memref<16x64xf32, #tpu.memory_space<vmem>>, vector<16x64xf32>,
    } else {
    }
    %c0 = arith.constant 0 : index
    %c0_1 = arith.constant 0 : index
    %3 = vector.load %arg7[%c0, %c0_1] : memref<16x64xf32, #tpu.memory_space<vmem>>, vector<16x64xf32>
    %c0_2 = arith.constant 0 : index
    %c0_3 = arith.constant 0 : index
    %4 = vector.load %arg3[%c0_2, %c0_3] : memref<16x32xbf16, #tpu.memory_space<vmem>>, vector<16x32xbf16>
    %c0_4 = arith.constant 0 : index
    %c0_5 = arith.constant 0 : index
    %5 = vector.load %arg4[%c0_4, %c0_5] : memref<32x64xbf16, #tpu.memory_space<vmem>>, vector<32x64xbf16>
    %cst = arith.constant dense<0.000000e+00> : vector<16x64xf32>
    %6 = tpu.matmul %4, %5, %cst {dimension_numbers = #tpu.dot_dimension_numbers<[1], [0], [0], [1], [0, 0, 1, 1], [], []>} : vector<16x32xbf16>, vector<32x64xbf16>, vector<16x64xf32> -> vector<16x64xf32>
    %7 = arith.addf %3, %6 : vector<16x64xf32>
    %c0_6 = arith.constant 0 : index
    %c0_7 = arith.constant 0 : index
    %8 = vector.load %arg7[%c0_6, %c0_7] : memref<16x64xf32, #tpu.memory_space<vmem>>, vector<16x64xf32>
    tpu.vector_store %arg7[%c0_6, %c0_7], %7 {strides = array<i32>} : memref<16x64xf32, #tpu.memory_space<vmem>>, vector<16x64xf32>,
    %c0_i32_8 = arith.constant 0 : i32
    %9 = arith.cmpi eq, %arg2, %c0_i32_8 : i32
    %10 = arith.extui %9 : i1 to i32
    %c0_i32_9 = arith.constant 0 : i32
    %11 = arith.cmpi ne, %10, %c0_i32_9 : i32
    scf.if %11 {
      %c0_10 = arith.constant 0 : index
      %c0_11 = arith.constant 0 : index
      %12 = vector.load %arg7[%c0_10, %c0_11] : memref<16x64xf32, #tpu.memory_space<vmem>>, vector<16x64xf32>
      %c0_12 = arith.constant 0 : index
      %c0_13 = arith.constant 0 : index
      %13 = vector.load %arg5[%c0_12, %c0_13] : memref<1x64xf32, #tpu.memory_space<vmem>>, vector<1x64xf32>
      %14 = vector.broadcast %13 : vector<1x64xf32> to vector<16x64xf32>
      %15 = arith.addf %12, %14 : vector<16x64xf32>
      %16 = arith.mulf %15, %15 : vector<16x64xf32>
      %17 = arith.mulf %15, %16 : vector<16x64xf32>
      %cst_14 = arith.constant 4.471500e-02 : f32
      %18 = vector.broadcast %cst_14 : f32 to vector<16x64xf32>
      %19 = arith.mulf %18, %17 : vector<16x64xf32>
      %20 = arith.addf %15, %19 : vector<16x64xf32>
      %cst_15 = arith.constant 0.797884583 : f32
      %21 = vector.broadcast %cst_15 : f32 to vector<16x64xf32>
      %22 = arith.mulf %21, %20 : vector<16x64xf32>
      %23 = math.tanh %22 : vector<16x64xf32>
      %cst_16 = arith.constant 1.000000e+00 : f32
      %24 = vector.broadcast %cst_16 : f32 to vector<16x64xf32>
      %25 = arith.addf %24, %23 : vector<16x64xf32>
      %cst_17 = arith.constant 5.000000e-01 : f32
      %26 = vector.broadcast %cst_17 : f32 to vector<16x64xf32>
      %27 = arith.mulf %26, %25 : vector<16x64xf32>
      %28 = arith.mulf %15, %27 : vector<16x64xf32>
      %29 = arith.truncf %28 : vector<16x64xf32> to vector<16x64xbf16>
      %c0_18 = arith.constant 0 : index
      %c0_19 = arith.constant 0 : index
      %30 = vector.load %arg6[%c0_18, %c0_19] : memref<16x64xbf16, #tpu.memory_space<vmem>>, vector<16x64xbf16>
      tpu.vector_store %arg6[%c0_18, %c0_19], %29 {strides = array<i32>} : memref<16x64xbf16, #tpu.memory_space<vmem>>, vector<16x64xbf16>,
    } else {
    }
    return
  }
  func.func @transform_0(%arg0: i32, %arg1: i32, %arg2: i32) -> (i32, i32) {
    %c0_i32 = arith.constant 0 : i32
    return %arg0, %arg2 : i32, i32
  }
  func.func @transform_1(%arg0: i32, %arg1: i32, %arg2: i32) -> (i32, i32) {
    %c0_i32 = arith.constant 0 : i32
    return %arg2, %arg1 : i32, i32
  }
  func.func @transform_2(%arg0: i32, %arg1: i32, %arg2: i32) -> (i32, i32) {
    %c0_i32 = arith.constant 0 : i32
    %c0_i32_0 = arith.constant 0 : i32
    return %c0_i32, %arg1 : i32, i32
  }
  func.func @transform_3(%arg0: i32, %arg1: i32, %arg2: i32) -> (i32, i32) {
    %c0_i32 = arith.constant 0 : i32
    return %arg0, %arg1 : i32, i32
  }
}

module attributes {stable_mosaic.version = 11 : i64} {
  func.func @_dense_add_ln_kernel(%arg0: i32, %arg1: i32, %arg2: memref<16x64xbf16, #tpu.memory_space<vmem>>, %arg3: memref<64x32xbf16, #tpu.memory_space<vmem>>, %arg4: memref<1x32xf32, #tpu.memory_space<vmem>>, %arg5: memref<16x32xbf16, #tpu.memory_space<vmem>>, %arg6: memref<1x32xf32, #tpu.memory_space<vmem>>, %arg7: memref<1x32xf32, #tpu.memory_space<vmem>>, %arg8: memref<16x32xbf16, #tpu.memory_space<vmem>>, %arg9: memref<16x32xf32, #tpu.memory_space<vmem>>) attributes {dimension_semantics = [#tpu.dimension_semantics<parallel>, #tpu.dimension_semantics<arbitrary>], iteration_bounds = array<i64: 1, 1>, scalar_prefetch = 0 : i64, scratch_operands = 1 : i64, tpu.core_type = #tpu.core_type<tc>, window_params = [{transform_indices = @transform_0, window_bounds = array<i64: 16, 64>}, {transform_indices = @transform_1, window_bounds = array<i64: 64, 32>}, {pipeline_mode = #tpu.pipeline_mode<synchronous>, transform_indices = @transform_2, window_bounds = array<i64: 1, 32>}, {transform_indices = @transform_3, window_bounds = array<i64: 16, 32>}, {pipeline_mode = #tpu.pipeline_mode<synchronous>, transform_indices = @transform_4, window_bounds = array<i64: 1, 32>}, {pipeline_mode = #tpu.pipeline_mode<synchronous>, transform_indices = @transform_5, window_bounds = array<i64: 1, 32>}, {transform_indices = @transform_6, window_bounds = array<i64: 16, 32>}]} {
    %c0_i32 = arith.constant 0 : i32
    %0 = arith.cmpi eq, %arg1, %c0_i32 : i32
    %1 = arith.extui %0 : i1 to i32
    %c0_i32_0 = arith.constant 0 : i32
    %2 = arith.cmpi ne, %1, %c0_i32_0 : i32
    scf.if %2 {
      %cst_10 = arith.constant 0.000000e+00 : f32
      %12 = vector.broadcast %cst_10 : f32 to vector<16x32xf32>
      %c0_11 = arith.constant 0 : index
      %c0_12 = arith.constant 0 : index
      %13 = vector.load %arg9[%c0_11, %c0_12] : memref<16x32xf32, #tpu.memory_space<vmem>>, vector<16x32xf32>
      tpu.vector_store %arg9[%c0_11, %c0_12], %12 {strides = array<i32>} : memref<16x32xf32, #tpu.memory_space<vmem>>, vector<16x32xf32>,
    } else {
    }
    %c0 = arith.constant 0 : index
    %c0_1 = arith.constant 0 : index
    %3 = vector.load %arg9[%c0, %c0_1] : memref<16x32xf32, #tpu.memory_space<vmem>>, vector<16x32xf32>
    %c0_2 = arith.constant 0 : index
    %c0_3 = arith.constant 0 : index
    %4 = vector.load %arg2[%c0_2, %c0_3] : memref<16x64xbf16, #tpu.memory_space<vmem>>, vector<16x64xbf16>
    %c0_4 = arith.constant 0 : index
    %c0_5 = arith.constant 0 : index
    %5 = vector.load %arg3[%c0_4, %c0_5] : memref<64x32xbf16, #tpu.memory_space<vmem>>, vector<64x32xbf16>
    %cst = arith.constant dense<0.000000e+00> : vector<16x32xf32>
    %6 = tpu.matmul %4, %5, %cst {dimension_numbers = #tpu.dot_dimension_numbers<[1], [0], [0], [1], [0, 0, 1, 1], [], []>} : vector<16x64xbf16>, vector<64x32xbf16>, vector<16x32xf32> -> vector<16x32xf32>
    %7 = arith.addf %3, %6 : vector<16x32xf32>
    %c0_6 = arith.constant 0 : index
    %c0_7 = arith.constant 0 : index
    %8 = vector.load %arg9[%c0_6, %c0_7] : memref<16x32xf32, #tpu.memory_space<vmem>>, vector<16x32xf32>
    tpu.vector_store %arg9[%c0_6, %c0_7], %7 {strides = array<i32>} : memref<16x32xf32, #tpu.memory_space<vmem>>, vector<16x32xf32>,
    %c0_i32_8 = arith.constant 0 : i32
    %9 = arith.cmpi eq, %arg1, %c0_i32_8 : i32
    %10 = arith.extui %9 : i1 to i32
    %c0_i32_9 = arith.constant 0 : i32
    %11 = arith.cmpi ne, %10, %c0_i32_9 : i32
    scf.if %11 {
      %c0_10 = arith.constant 0 : index
      %c0_11 = arith.constant 0 : index
      %12 = vector.load %arg9[%c0_10, %c0_11] : memref<16x32xf32, #tpu.memory_space<vmem>>, vector<16x32xf32>
      %c0_12 = arith.constant 0 : index
      %c0_13 = arith.constant 0 : index
      %13 = vector.load %arg4[%c0_12, %c0_13] : memref<1x32xf32, #tpu.memory_space<vmem>>, vector<1x32xf32>
      %14 = vector.broadcast %13 : vector<1x32xf32> to vector<16x32xf32>
      %15 = arith.addf %12, %14 : vector<16x32xf32>
      %c0_14 = arith.constant 0 : index
      %c0_15 = arith.constant 0 : index
      %16 = vector.load %arg5[%c0_14, %c0_15] : memref<16x32xbf16, #tpu.memory_space<vmem>>, vector<16x32xbf16>
      %17 = arith.extf %16 : vector<16x32xbf16> to vector<16x32xf32>
      %18 = arith.addf %15, %17 : vector<16x32xf32>
      %cst_16 = arith.constant dense<0.000000e+00> : vector<16xf32>
      %19 = vector.multi_reduction <add>, %18, %cst_16 [1] : vector<16x32xf32> to vector<16xf32>
      %20 = vector.shape_cast %19 : vector<16xf32> to vector<16x1xf32>
      %cst_17 = arith.constant 3.200000e+01 : f32
      %21 = vector.broadcast %cst_17 : f32 to vector<16x1xf32>
      %22 = arith.divf %20, %21 : vector<16x1xf32>
      %23 = vector.broadcast %22 : vector<16x1xf32> to vector<16x32xf32>
      %24 = arith.subf %18, %23 : vector<16x32xf32>
      %25 = vector.broadcast %22 : vector<16x1xf32> to vector<16x32xf32>
      %26 = arith.subf %18, %25 : vector<16x32xf32>
      %27 = arith.mulf %24, %26 : vector<16x32xf32>
      %cst_18 = arith.constant dense<0.000000e+00> : vector<16xf32>
      %28 = vector.multi_reduction <add>, %27, %cst_18 [1] : vector<16x32xf32> to vector<16xf32>
      %29 = vector.shape_cast %28 : vector<16xf32> to vector<16x1xf32>
      %cst_19 = arith.constant 3.200000e+01 : f32
      %30 = vector.broadcast %cst_19 : f32 to vector<16x1xf32>
      %31 = arith.divf %29, %30 : vector<16x1xf32>
      %cst_20 = arith.constant 9.99999996E-13 : f32
      %32 = vector.broadcast %cst_20 : f32 to vector<16x1xf32>
      %33 = arith.addf %31, %32 : vector<16x1xf32>
      %34 = math.rsqrt %33 : vector<16x1xf32>
      %35 = vector.broadcast %22 : vector<16x1xf32> to vector<16x32xf32>
      %36 = arith.subf %18, %35 : vector<16x32xf32>
      %37 = vector.broadcast %34 : vector<16x1xf32> to vector<16x32xf32>
      %38 = arith.mulf %36, %37 : vector<16x32xf32>
      %c0_21 = arith.constant 0 : index
      %c0_22 = arith.constant 0 : index
      %39 = vector.load %arg6[%c0_21, %c0_22] : memref<1x32xf32, #tpu.memory_space<vmem>>, vector<1x32xf32>
      %40 = vector.broadcast %39 : vector<1x32xf32> to vector<16x32xf32>
      %41 = arith.mulf %38, %40 : vector<16x32xf32>
      %c0_23 = arith.constant 0 : index
      %c0_24 = arith.constant 0 : index
      %42 = vector.load %arg7[%c0_23, %c0_24] : memref<1x32xf32, #tpu.memory_space<vmem>>, vector<1x32xf32>
      %43 = vector.broadcast %42 : vector<1x32xf32> to vector<16x32xf32>
      %44 = arith.addf %41, %43 : vector<16x32xf32>
      %45 = arith.truncf %44 : vector<16x32xf32> to vector<16x32xbf16>
      %c0_25 = arith.constant 0 : index
      %c0_26 = arith.constant 0 : index
      %46 = vector.load %arg8[%c0_25, %c0_26] : memref<16x32xbf16, #tpu.memory_space<vmem>>, vector<16x32xbf16>
      tpu.vector_store %arg8[%c0_25, %c0_26], %45 {strides = array<i32>} : memref<16x32xbf16, #tpu.memory_space<vmem>>, vector<16x32xbf16>,
    } else {
    }
    return
  }
  func.func @transform_0(%arg0: i32, %arg1: i32) -> (i32, i32) {
    %c0_i32 = arith.constant 0 : i32
    return %arg0, %arg1 : i32, i32
  }
  func.func @transform_1(%arg0: i32, %arg1: i32) -> (i32, i32) {
    %c0_i32 = arith.constant 0 : i32
    %c0_i32_0 = arith.constant 0 : i32
    return %arg1, %c0_i32 : i32, i32
  }
  func.func @transform_2(%arg0: i32, %arg1: i32) -> (i32, i32) {
    %c0_i32 = arith.constant 0 : i32
    %c0_i32_0 = arith.constant 0 : i32
    %c0_i32_1 = arith.constant 0 : i32
    return %c0_i32, %c0_i32_0 : i32, i32
  }
  func.func @transform_3(%arg0: i32, %arg1: i32) -> (i32, i32) {
    %c0_i32 = arith.constant 0 : i32
    %c0_i32_0 = arith.constant 0 : i32
    return %arg0, %c0_i32 : i32, i32
  }
  func.func @transform_4(%arg0: i32, %arg1: i32) -> (i32, i32) {
    %c0_i32 = arith.constant 0 : i32
    %c0_i32_0 = arith.constant 0 : i32
    %c0_i32_1 = arith.constant 0 : i32
    return %c0_i32, %c0_i32_0 : i32, i32
  }
  func.func @transform_5(%arg0: i32, %arg1: i32) -> (i32, i32) {
    %c0_i32 = arith.constant 0 : i32
    %c0_i32_0 = arith.constant 0 : i32
    %c0_i32_1 = arith.constant 0 : i32
    return %c0_i32, %c0_i32_0 : i32, i32
  }
  func.func @transform_6(%arg0: i32, %arg1: i32) -> (i32, i32) {
    %c0_i32 = arith.constant 0 : i32
    %c0_i32_0 = arith.constant 0 : i32
    return %arg0, %c0_i32 : i32, i32
  }
}

module attributes {stable_mosaic.version = 11 : i64} {
  func.func @_dense_kernel(%arg0: i32, %arg1: i32, %arg2: i32, %arg3: memref<2x32xbf16, #tpu.memory_space<vmem>>, %arg4: memref<32x32xbf16, #tpu.memory_space<vmem>>, %arg5: memref<1x32xf32, #tpu.memory_space<vmem>>, %arg6: memref<2x32xf32, #tpu.memory_space<vmem>>, %arg7: memref<2x32xf32, #tpu.memory_space<vmem>>) attributes {dimension_semantics = [#tpu.dimension_semantics<parallel>, #tpu.dimension_semantics<parallel>, #tpu.dimension_semantics<arbitrary>], iteration_bounds = array<i64: 1, 1, 1>, scalar_prefetch = 0 : i64, scratch_operands = 1 : i64, tpu.core_type = #tpu.core_type<tc>, window_params = [{transform_indices = @transform_0, window_bounds = array<i64: 2, 32>}, {transform_indices = @transform_1, window_bounds = array<i64: 32, 32>}, {transform_indices = @transform_2, window_bounds = array<i64: 1, 32>}, {transform_indices = @transform_3, window_bounds = array<i64: 2, 32>}]} {
    %c0_i32 = arith.constant 0 : i32
    %0 = arith.cmpi eq, %arg2, %c0_i32 : i32
    %1 = arith.extui %0 : i1 to i32
    %c0_i32_0 = arith.constant 0 : i32
    %2 = arith.cmpi ne, %1, %c0_i32_0 : i32
    scf.if %2 {
      %cst_10 = arith.constant 0.000000e+00 : f32
      %12 = vector.broadcast %cst_10 : f32 to vector<2x32xf32>
      %c0_11 = arith.constant 0 : index
      %c0_12 = arith.constant 0 : index
      %13 = vector.load %arg7[%c0_11, %c0_12] : memref<2x32xf32, #tpu.memory_space<vmem>>, vector<2x32xf32>
      tpu.vector_store %arg7[%c0_11, %c0_12], %12 {strides = array<i32>} : memref<2x32xf32, #tpu.memory_space<vmem>>, vector<2x32xf32>,
    } else {
    }
    %c0 = arith.constant 0 : index
    %c0_1 = arith.constant 0 : index
    %3 = vector.load %arg7[%c0, %c0_1] : memref<2x32xf32, #tpu.memory_space<vmem>>, vector<2x32xf32>
    %c0_2 = arith.constant 0 : index
    %c0_3 = arith.constant 0 : index
    %4 = vector.load %arg3[%c0_2, %c0_3] : memref<2x32xbf16, #tpu.memory_space<vmem>>, vector<2x32xbf16>
    %c0_4 = arith.constant 0 : index
    %c0_5 = arith.constant 0 : index
    %5 = vector.load %arg4[%c0_4, %c0_5] : memref<32x32xbf16, #tpu.memory_space<vmem>>, vector<32x32xbf16>
    %cst = arith.constant dense<0.000000e+00> : vector<2x32xf32>
    %6 = tpu.matmul %4, %5, %cst {dimension_numbers = #tpu.dot_dimension_numbers<[1], [0], [0], [1], [0, 0, 1, 1], [], []>} : vector<2x32xbf16>, vector<32x32xbf16>, vector<2x32xf32> -> vector<2x32xf32>
    %7 = arith.addf %3, %6 : vector<2x32xf32>
    %c0_6 = arith.constant 0 : index
    %c0_7 = arith.constant 0 : index
    %8 = vector.load %arg7[%c0_6, %c0_7] : memref<2x32xf32, #tpu.memory_space<vmem>>, vector<2x32xf32>
    tpu.vector_store %arg7[%c0_6, %c0_7], %7 {strides = array<i32>} : memref<2x32xf32, #tpu.memory_space<vmem>>, vector<2x32xf32>,
    %c0_i32_8 = arith.constant 0 : i32
    %9 = arith.cmpi eq, %arg2, %c0_i32_8 : i32
    %10 = arith.extui %9 : i1 to i32
    %c0_i32_9 = arith.constant 0 : i32
    %11 = arith.cmpi ne, %10, %c0_i32_9 : i32
    scf.if %11 {
      %c0_10 = arith.constant 0 : index
      %c0_11 = arith.constant 0 : index
      %12 = vector.load %arg7[%c0_10, %c0_11] : memref<2x32xf32, #tpu.memory_space<vmem>>, vector<2x32xf32>
      %c0_12 = arith.constant 0 : index
      %c0_13 = arith.constant 0 : index
      %13 = vector.load %arg5[%c0_12, %c0_13] : memref<1x32xf32, #tpu.memory_space<vmem>>, vector<1x32xf32>
      %14 = vector.broadcast %13 : vector<1x32xf32> to vector<2x32xf32>
      %15 = arith.addf %12, %14 : vector<2x32xf32>
      %16 = math.tanh %15 : vector<2x32xf32>
      %c0_14 = arith.constant 0 : index
      %c0_15 = arith.constant 0 : index
      %17 = vector.load %arg6[%c0_14, %c0_15] : memref<2x32xf32, #tpu.memory_space<vmem>>, vector<2x32xf32>
      tpu.vector_store %arg6[%c0_14, %c0_15], %16 {strides = array<i32>} : memref<2x32xf32, #tpu.memory_space<vmem>>, vector<2x32xf32>,
    } else {
    }
    return
  }
  func.func @transform_0(%arg0: i32, %arg1: i32, %arg2: i32) -> (i32, i32) {
    %c0_i32 = arith.constant 0 : i32
    return %arg0, %arg2 : i32, i32
  }
  func.func @transform_1(%arg0: i32, %arg1: i32, %arg2: i32) -> (i32, i32) {
    %c0_i32 = arith.constant 0 : i32
    return %arg2, %arg1 : i32, i32
  }
  func.func @transform_2(%arg0: i32, %arg1: i32, %arg2: i32) -> (i32, i32) {
    %c0_i32 = arith.constant 0 : i32
    %c0_i32_0 = arith.constant 0 : i32
    return %c0_i32, %arg1 : i32, i32
  }
  func.func @transform_3(%arg0: i32, %arg1: i32, %arg2: i32) -> (i32, i32) {
    %c0_i32 = arith.constant 0 : i32
    return %arg0, %arg1 : i32, i32
  }
}

</mosaic_0001>

<llo_original>
// kernel: trans_gc_forward.15
$region0: #{trans_gc_forward.15}
  #allocation0 [shape = 'u32[]', space=smem, size = 0x4, offset = 0x4, fixed_abs, tag = 'smem constant byte address 0x4 - core index']
  #allocation1 [shape = 'u32[144,128]{1,0:T(1,128)}', space=vmem, size = 0x12000, scoped, tag = 'internal scratch']
  #allocation2 [shape = 'f32[16,32]{1,0:T(8,128)}', space=vmem, size = 0x2000, scoped, tag = 'scratch operand']
  %s0 = inlined_call_operand.vmem [shape: bf16[16,32], index: 0, kind: input, shape index: {}]
  %s1 = inlined_call_operand.vmem [shape: bf16[32,32], index: 1, kind: input, shape index: {}]
  %s2 = inlined_call_operand.vmem [shape: f32[1,32], index: 2, kind: input, shape index: {}]
  %s3 = inlined_call_operand.vmem [shape: bf16[16,32], index: 3, kind: input, shape index: {}]
  %s4 = inlined_call_operand.vmem [shape: f32[1,32], index: 4, kind: input, shape index: {}]
  %s5 = inlined_call_operand.vmem [shape: f32[1,32], index: 5, kind: input, shape index: {}]
  %s6 = inlined_call_operand.vmem [shape: bf16[16,32], index: 6, kind: output, shape index: {}]
  %s7 = sld [smem:[#allocation0]]
  $region42: #{trans_gc_forward.15} parent=0
    _
  %s9 = ssub.s32 1, %s7
  %s10 = scalar_select 0, %s9, %s7
  // Predicated region
  $region2: #{trans_gc_forward.15} parent=0 // pred_check
    _
  $region3: #{trans_gc_forward.15} parent=0 // pred_check_branch
    %12 = sbr.rel (0) target = $region5
  $region4: #{trans_gc_forward.15} parent=0 // pred_region
    _
  $region5: #{trans_gc_forward.15} parent=0 // pred_fallthru
    _
  // Predicated region
  $region6: #{trans_gc_forward.15} parent=0 // pred_check
    _
  $region7: #{trans_gc_forward.15} parent=0 // pred_check_branch
    %14 = sbr.rel (0) target = $region9
  $region8: #{trans_gc_forward.15} parent=0 // pred_region
    _
  $region9: #{trans_gc_forward.15} parent=0 // pred_fallthru
    _
  // Predicated region
  $region10: #{trans_gc_forward.15} parent=0 // pred_check
    _
  $region11: #{trans_gc_forward.15} parent=0 // pred_check_branch
    %16 = sbr.rel (0) target = $region13
  $region12: #{trans_gc_forward.15} parent=0 // pred_region
    _
  $region13: #{trans_gc_forward.15} parent=0 // pred_fallthru
    _
  // Predicated region
  $region14: #{trans_gc_forward.15} parent=0 // pred_check
    _
  $region15: #{trans_gc_forward.15} parent=0 // pred_check_branch
    %18 = sbr.rel (0) target = $region17
  $region16: #{trans_gc_forward.15} parent=0 // pred_region
    _
  $region17: #{trans_gc_forward.15} parent=0 // pred_fallthru
    _
  // Predicated region
  $region18: #{trans_gc_forward.15} parent=0 // pred_check
    _
  $region19: #{trans_gc_forward.15} parent=0 // pred_check_branch
    %20 = sbr.rel (0) target = $region21
  $region20: #{trans_gc_forward.15} parent=0 // pred_region
    _
  $region21: #{trans_gc_forward.15} parent=0 // pred_fallthru
    _
  // Predicated region
  $region22: #{trans_gc_forward.15} parent=0 // pred_check
    _
  $region23: #{trans_gc_forward.15} parent=0 // pred_check_branch
    %22 = sbr.rel (0) target = $region25
  $region24: #{trans_gc_forward.15} parent=0 // pred_region
    _
  $region25: #{trans_gc_forward.15} parent=0 // pred_fallthru
    _
  %p24 = scmp.eq.s32.totalorder 0, 0
  // Predicated region
  $region26: #{trans_gc_forward.15} parent=0 // pred_check
    %p25 = pneg %p24
  $region27: #{trans_gc_forward.15} parent=0 // pred_check_branch
    %27 = sbr.rel (%p25) target = $region29
  $region28: #{trans_gc_forward.15} parent=0 // pred_region
    %vm28 = vcmask 261120
    %29 = vst.msk [vmem:[#allocation2] sm:$0xff] %vm28, 0.0
    %30 = vst.msk [vmem:[#allocation2 + $0x8] sm:$0xff] %vm28, 0.0
  $region29: #{trans_gc_forward.15} parent=0 // pred_fallthru
    _
  %v31 = vld [vmem:[#allocation2] sm:$0xff]
  %v32 = vld [vmem:[#allocation2 + $0x8] sm:$0xff]
  %v33 = vld [vmem:[%s0] sm:$0xf]
  %v34 = vld [vmem:[%s0 + $0x4] sm:$0xf]
  %v35 = vld [vmem:[%s1] sm:$0xf]
  %v36 = vld [vmem:[%s1 + $0x4] sm:$0xf]
  %v37 = vld [vmem:[%s1 + $0x8] sm:$0xf]
  %v38 = vld [vmem:[%s1 + $0xc] sm:$0xf]
  %v41 = vunpack.c.l.b16 %v33
  %v42 = vunpack.c.l.b16 %v34
  %v43 = vpack.c.b16 %v42, %v41
  %v48 = vunpack.c.l.b16 %v35
  %v49 = vunpack.c.l.b16 %v36
  %v50 = vunpack.c.l.b16 %v37
  %v51 = vunpack.c.l.b16 %v38
  %v52 = vpack.c.b16 %v49, %v48
  %v53 = vpack.c.b16 %v51, %v50
  %vm56 = vcmask 261120
  %v58 = vsel %vm56, %v43, 0
  %60 = vmatprep.subr.bf16.mxu0 0
  %61 = vmatpush1.bf16.msra.mxu0 %v52
  %62 = vmatprep.subr.bf16.mxu0 0
  %63 = vmatpush1.bf16.msra.mxu0 %v53
  %64 = vmatprep.subr.bf16.mxu0 0
  %65 = vmatpush1.bf16.msra.mxu0 0
  %66 = vmatprep.subr.bf16.mxu0 0
  %67 = vmatpush1.bf16.msra.mxu0 0
  %68 = vmatprep.subr.bf16.mxu0 0
  %69 = vmatpush1.bf16.msra.mxu0 0
  %70 = vmatprep.subr.bf16.mxu0 0
  %71 = vmatpush1.bf16.msra.mxu0 0
  %72 = vmatprep.subr.bf16.mxu0 0
  %73 = vmatpush1.bf16.msra.mxu0 0
  %74 = vmatprep.subr.bf16.mxu0 0
  %75 = vmatpush1.bf16.msra.mxu0 0
  %76 = vmatprep.subr.bf16.mxu0 0
  %77 = vmatpush1.bf16.msra.mxu0 0
  %78 = vmatprep.subr.bf16.mxu0 0
  %79 = vmatpush1.bf16.msra.mxu0 0
  %80 = vmatprep.subr.bf16.mxu0 0
  %81 = vmatpush1.bf16.msra.mxu0 0
  %82 = vmatprep.subr.bf16.mxu0 0
  %83 = vmatpush1.bf16.msra.mxu0 0
  %84 = vmatprep.subr.bf16.mxu0 0
  %85 = vmatpush1.bf16.msra.mxu0 0
  %86 = vmatprep.subr.bf16.mxu0 0
  %87 = vmatpush1.bf16.msra.mxu0 0
  %88 = vmatprep.subr.bf16.mxu0 0
  %89 = vmatpush1.bf16.msra.mxu0 0
  %90 = vmatprep.subr.bf16.mxu0 0
  %91 = vmatpush1.bf16.msra.mxu0 0
  %92 = vmatprep.mubr.bf16.mxu0 0
  %93 = vmatmul.mubr.bf16.gmra.mrb[0].mxu0 %v58
  %v94 = vpop.f32.mrb[0].mxu0
  %v95 = vadd.f32 0.0, %v94
  %v96 = vpop.f32.mrb[0].mxu0
  %v97 = vpop.f32.mrb[0].mxu0
  %v98 = vadd.f32 0.0, %v97
  %v99 = vpop.f32.mrb[0].mxu0
  %100 = vdwg.mxu0
  %v101 = vadd.f32 %v31, %v95
  %v102 = vadd.f32 %v32, %v98
  %103 = vst.msk [vmem:[#allocation2] sm:$0xff] %vm56, %v101
  %104 = vst.msk [vmem:[#allocation2 + $0x8] sm:$0xff] %vm56, %v102
  // Predicated region
  $region30: #{trans_gc_forward.15} parent=0 // pred_check
    %p105 = pneg %p24
  $region31: #{trans_gc_forward.15} parent=0 // pred_check_branch
    %107 = sbr.rel (%p105) target = $region33
  $region32: #{trans_gc_forward.15} parent=0 // pred_region
    %v108 = vld [vmem:[#allocation2] sm:$0xff]
    %v109 = vld [vmem:[#allocation2 + $0x8] sm:$0xff]
    %v110 = vld [vmem:[%s2] sm:$0x1]
    %v112 = vlaneseq
    %v113 = vshrl.u32 %v112, 7
    %v114 = vsub.s32 0, %v113
    %v115 = vrot.slane %v110, %v114
    %v117 = vadd.f32 %v108, %v115
    %v118 = vadd.f32 %v109, %v115
    %v119 = vld [vmem:[%s3] sm:$0xf]
    %v120 = vld [vmem:[%s3 + $0x4] sm:$0xf]
    %v121 = vunpack.c.l.bf16 %v119
    %v122 = vunpack.c.l.bf16 %v120
    %v123 = vadd.f32 %v117, %v121
    %v124 = vadd.f32 %v118, %v122
    %v125 = vsel %vm56, %v123, 0.0
    %126 = vadd.xlane.f32.xlu0 %v125
    %v127 = vpop.xlane.xlu0 %126
    %v128 = vsel %vm56, %v124, 0.0
    %129 = vadd.xlane.f32.xlu0 %v128
    %v130 = vpop.xlane.xlu0 %129
    %v131 = vrcp.pop 32.0
    %v132 = vmul.f32 %v127, %v131
    %v133 = vmul.f32 %v130, %v131
    %v134 = vsub.f32 %v123, %v132
    %v135 = vsub.f32 %v124, %v133
    %v136 = vmul.f32 %v134, %v134
    %v137 = vmul.f32 %v135, %v135
    %v138 = vsel %vm56, %v136, 0.0
    %139 = vadd.xlane.f32.xlu0 %v138
    %v140 = vpop.xlane.xlu0 %139
    %v141 = vsel %vm56, %v137, 0.0
    %142 = vadd.xlane.f32.xlu0 %v141
    %v143 = vpop.xlane.xlu0 %142
    %v144 = vmul.f32 %v140, %v131
    %v145 = vmul.f32 %v143, %v131
    %v146 = vadd.f32 %v144, 1e-12
    %v147 = vadd.f32 %v145, 1e-12
    %v148 = vrsqrt.pop %v146
    %v149 = vrsqrt.pop %v147
    %v150 = vmul.f32 %v134, %v148
    %v151 = vmul.f32 %v135, %v149
    %v152 = vld [vmem:[%s4] sm:$0x1]
    %v154 = vlaneseq
    %v155 = vshrl.u32 %v154, 7
    %v156 = vsub.s32 0, %v155
    %v157 = vrot.slane %v152, %v156
    %v159 = vmul.f32 %v150, %v157
    %v160 = vmul.f32 %v151, %v157
    %v161 = vld [vmem:[%s5] sm:$0x1]
    %v163 = vlaneseq
    %v164 = vshrl.u32 %v163, 7
    %v165 = vsub.s32 0, %v164
    %v166 = vrot.slane %v161, %v165
    %v168 = vadd.f32 %v159, %v166
    %v169 = vadd.f32 %v160, %v166
    %v170 = vpack.c.bf16 %v169, %v168
    %v172 = vunpack.c.l.b16 %v170
    %v173 = vunpack.c.h.b16 %v170
    %v174 = vpack.c.b16 %v172, %v172
    %v175 = vpack.c.b16 %v173, %v173
    %vm178 = vcmask 257024
    %179 = vst.msk [vmem:[%s6] sm:$0xf] %vm178, %v174
    %180 = vst.msk [vmem:[%s6 + $0x4] sm:$0xf] %vm178, %v175
  $region33: #{trans_gc_forward.15} parent=0 // pred_fallthru
    _
  // Predicated region
  $region34: #{trans_gc_forward.15} parent=0 // pred_check
    _
  $region35: #{trans_gc_forward.15} parent=0 // pred_check_branch
    %182 = sbr.rel (0) target = $region37
  $region36: #{trans_gc_forward.15} parent=0 // pred_region
    _
  $region37: #{trans_gc_forward.15} parent=0 // pred_fallthru
    _
  // Predicated region
  $region38: #{trans_gc_forward.15} parent=0 // pred_check
    _
  $region39: #{trans_gc_forward.15} parent=0 // pred_check_branch
    %184 = sbr.rel (0) target = $region41
  $region40: #{trans_gc_forward.15} parent=0 // pred_region
    _
  $region41: #{trans_gc_forward.15} parent=0 // pred_fallthru
    _

// kernel: trans_gc_forward.12
$region0: #{trans_gc_forward.12}
  #allocation0 [shape = 'u32[]', space=smem, size = 0x4, offset = 0x4, fixed_abs, tag = 'smem constant byte address 0x4 - core index']
  #allocation1 [shape = 'u32[144,128]{1,0:T(1,128)}', space=vmem, size = 0x12000, scoped, tag = 'internal scratch']
  %s0 = inlined_call_operand.vmem [shape: f32[16,32], index: 0, kind: input, shape index: {}]
  %s1 = inlined_call_operand.vmem [shape: f32[1,32], index: 1, kind: input, shape index: {}]
  %s2 = inlined_call_operand.vmem [shape: f32[1,32], index: 2, kind: input, shape index: {}]
  %s3 = inlined_call_operand.vmem [shape: bf16[16,32], index: 3, kind: output, shape index: {}]
  %s4 = sld [smem:[#allocation0]]
  $region22: #{trans_gc_forward.12} parent=0
    _
  %s6 = ssub.s32 1, %s4
  %s7 = scalar_select 0, %s6, %s4
  // Predicated region
  $region2: #{trans_gc_forward.12} parent=0 // pred_check
    _
  $region3: #{trans_gc_forward.12} parent=0 // pred_check_branch
    %9 = sbr.rel (0) target = $region5
  $region4: #{trans_gc_forward.12} parent=0 // pred_region
    _
  $region5: #{trans_gc_forward.12} parent=0 // pred_fallthru
    _
  // Predicated region
  $region6: #{trans_gc_forward.12} parent=0 // pred_check
    _
  $region7: #{trans_gc_forward.12} parent=0 // pred_check_branch
    %11 = sbr.rel (0) target = $region9
  $region8: #{trans_gc_forward.12} parent=0 // pred_region
    _
  $region9: #{trans_gc_forward.12} parent=0 // pred_fallthru
    _
  // Predicated region
  $region10: #{trans_gc_forward.12} parent=0 // pred_check
    _
  $region11: #{trans_gc_forward.12} parent=0 // pred_check_branch
    %13 = sbr.rel (0) target = $region13
  $region12: #{trans_gc_forward.12} parent=0 // pred_region
    _
  $region13: #{trans_gc_forward.12} parent=0 // pred_fallthru
    _
  %v14 = vld [vmem:[%s0] sm:$0xff]
  %v15 = vld [vmem:[%s0 + $0x8] sm:$0xff]
  %vm16 = vcmask 261120
  %v17 = vsel %vm16, %v14, 0.0
  %18 = vadd.xlane.f32.xlu0 %v17
  %v19 = vpop.xlane.xlu0 %18
  %v20 = vsel %vm16, %v15, 0.0
  %21 = vadd.xlane.f32.xlu0 %v20
  %v22 = vpop.xlane.xlu0 %21
  %v23 = vrcp.pop 32.0
  %v24 = vmul.f32 %v19, %v23
  %v25 = vmul.f32 %v22, %v23
  %v26 = vsub.f32 %v14, %v24
  %v27 = vsub.f32 %v15, %v25
  %v28 = vmul.f32 %v26, %v26
  %v29 = vmul.f32 %v27, %v27
  %v30 = vsel %vm16, %v28, 0.0
  %31 = vadd.xlane.f32.xlu0 %v30
  %v32 = vpop.xlane.xlu0 %31
  %v33 = vsel %vm16, %v29, 0.0
  %34 = vadd.xlane.f32.xlu0 %v33
  %v35 = vpop.xlane.xlu0 %34
  %v36 = vmul.f32 %v32, %v23
  %v37 = vmul.f32 %v35, %v23
  %v38 = vadd.f32 %v36, 1e-12
  %v39 = vadd.f32 %v37, 1e-12
  %v40 = vrsqrt.pop %v38
  %v41 = vrsqrt.pop %v39
  %v42 = vmul.f32 %v26, %v40
  %v43 = vmul.f32 %v27, %v41
  %v44 = vld [vmem:[%s1] sm:$0x1]
  %v46 = vlaneseq
  %v47 = vshrl.u32 %v46, 7
  %v48 = vsub.s32 0, %v47
  %v49 = vrot.slane %v44, %v48
  %v51 = vmul.f32 %v42, %v49
  %v52 = vmul.f32 %v43, %v49
  %v53 = vld [vmem:[%s2] sm:$0x1]
  %v55 = vlaneseq
  %v56 = vshrl.u32 %v55, 7
  %v57 = vsub.s32 0, %v56
  %v58 = vrot.slane %v53, %v57
  %v60 = vadd.f32 %v51, %v58
  %v61 = vadd.f32 %v52, %v58
  %v62 = vpack.c.bf16 %v61, %v60
  %v64 = vunpack.c.l.b16 %v62
  %v65 = vunpack.c.h.b16 %v62
  %v66 = vpack.c.b16 %v64, %v64
  %v67 = vpack.c.b16 %v65, %v65
  %vm70 = vcmask 257024
  %71 = vst.msk [vmem:[%s3] sm:$0xf] %vm70, %v66
  %72 = vst.msk [vmem:[%s3 + $0x4] sm:$0xf] %vm70, %v67
  // Predicated region
  $region14: #{trans_gc_forward.12} parent=0 // pred_check
    _
  $region15: #{trans_gc_forward.12} parent=0 // pred_check_branch
    %74 = sbr.rel (0) target = $region17
  $region16: #{trans_gc_forward.12} parent=0 // pred_region
    _
  $region17: #{trans_gc_forward.12} parent=0 // pred_fallthru
    _
  // Predicated region
  $region18: #{trans_gc_forward.12} parent=0 // pred_check
    _
  $region19: #{trans_gc_forward.12} parent=0 // pred_check_branch
    %76 = sbr.rel (0) target = $region21
  $region20: #{trans_gc_forward.12} parent=0 // pred_region
    _
  $region21: #{trans_gc_forward.12} parent=0 // pred_fallthru
    _

// kernel: trans_gc_forward.13
$region0: #{trans_gc_forward.13}
  #allocation0 [shape = 'u32[]', space=smem, size = 0x4, offset = 0x4, fixed_abs, tag = 'smem constant byte address 0x4 - core index']
  #allocation1 [shape = 'u32[144,128]{1,0:T(1,128)}', space=vmem, size = 0x12000, scoped, tag = 'internal scratch']
  #allocation2 [shape = 'f32[16,96]{1,0:T(8,128)}', space=vmem, size = 0x2000, scoped, tag = 'scratch operand']
  %s0 = inlined_call_operand.vmem [shape: bf16[16,32], index: 0, kind: input, shape index: {}]
  %s1 = inlined_call_operand.vmem [shape: bf16[32,96], index: 1, kind: input, shape index: {}]
  %s2 = inlined_call_operand.vmem [shape: f32[1,96], index: 2, kind: input, shape index: {}]
  %s3 = inlined_call_operand.vmem [shape: bf16[16,96], index: 3, kind: output, shape index: {}]
  %s4 = sld [smem:[#allocation0]]
  $region30: #{trans_gc_forward.13} parent=0
    _
  %s6 = ssub.s32 1, %s4
  %s7 = scalar_select 0, %s6, %s4
  // Predicated region
  $region2: #{trans_gc_forward.13} parent=0 // pred_check
    _
  $region3: #{trans_gc_forward.13} parent=0 // pred_check_branch
    %9 = sbr.rel (0) target = $region5
  $region4: #{trans_gc_forward.13} parent=0 // pred_region
    _
  $region5: #{trans_gc_forward.13} parent=0 // pred_fallthru
    _
  // Predicated region
  $region6: #{trans_gc_forward.13} parent=0 // pred_check
    _
  $region7: #{trans_gc_forward.13} parent=0 // pred_check_branch
    %11 = sbr.rel (0) target = $region9
  $region8: #{trans_gc_forward.13} parent=0 // pred_region
    _
  $region9: #{trans_gc_forward.13} parent=0 // pred_fallthru
    _
  // Predicated region
  $region10: #{trans_gc_forward.13} parent=0 // pred_check
    _
  $region11: #{trans_gc_forward.13} parent=0 // pred_check_branch
    %13 = sbr.rel (0) target = $region13
  $region12: #{trans_gc_forward.13} parent=0 // pred_region
    _
  $region13: #{trans_gc_forward.13} parent=0 // pred_fallthru
    _
  %p15 = scmp.eq.s32.totalorder 0, 0
  // Predicated region
  $region14: #{trans_gc_forward.13} parent=0 // pred_check
    %p16 = pneg %p15
  $region15: #{trans_gc_forward.13} parent=0 // pred_check_branch
    %18 = sbr.rel (%p16) target = $region17
  $region16: #{trans_gc_forward.13} parent=0 // pred_region
    %vm19 = vcmask 785408
    %20 = vst.msk [vmem:[#allocation2] sm:$0xff] %vm19, 0.0
    %21 = vst.msk [vmem:[#allocation2 + $0x8] sm:$0xff] %vm19, 0.0
  $region17: #{trans_gc_forward.13} parent=0 // pred_fallthru
    _
  %v22 = vld [vmem:[#allocation2] sm:$0xff]
  %v23 = vld [vmem:[#allocation2 + $0x8] sm:$0xff]
  %v24 = vld [vmem:[%s0] sm:$0xf]
  %v25 = vld [vmem:[%s0 + $0x4] sm:$0xf]
  %v26 = vld [vmem:[%s1] sm:$0xf]
  %v27 = vld [vmem:[%s1 + $0x4] sm:$0xf]
  %v28 = vld [vmem:[%s1 + $0x8] sm:$0xf]
  %v29 = vld [vmem:[%s1 + $0xc] sm:$0xf]
  %v32 = vunpack.c.l.b16 %v24
  %v33 = vunpack.c.l.b16 %v25
  %v34 = vpack.c.b16 %v33, %v32
  %v39 = vunpack.c.l.b16 %v26
  %v40 = vunpack.c.l.b16 %v27
  %v41 = vunpack.c.l.b16 %v28
  %v42 = vunpack.c.l.b16 %v29
  %v43 = vpack.c.b16 %v40, %v39
  %v44 = vpack.c.b16 %v42, %v41
  %vm47 = vcmask 261120
  %v49 = vsel %vm47, %v34, 0
  %51 = vmatprep.subr.bf16.mxu0 0
  %52 = vmatpush1.bf16.msra.mxu0 %v43
  %53 = vmatprep.subr.bf16.mxu0 0
  %54 = vmatpush1.bf16.msra.mxu0 %v44
  %55 = vmatprep.subr.bf16.mxu0 0
  %56 = vmatpush1.bf16.msra.mxu0 0
  %57 = vmatprep.subr.bf16.mxu0 0
  %58 = vmatpush1.bf16.msra.mxu0 0
  %59 = vmatprep.subr.bf16.mxu0 0
  %60 = vmatpush1.bf16.msra.mxu0 0
  %61 = vmatprep.subr.bf16.mxu0 0
  %62 = vmatpush1.bf16.msra.mxu0 0
  %63 = vmatprep.subr.bf16.mxu0 0
  %64 = vmatpush1.bf16.msra.mxu0 0
  %65 = vmatprep.subr.bf16.mxu0 0
  %66 = vmatpush1.bf16.msra.mxu0 0
  %67 = vmatprep.subr.bf16.mxu0 0
  %68 = vmatpush1.bf16.msra.mxu0 0
  %69 = vmatprep.subr.bf16.mxu0 0
  %70 = vmatpush1.bf16.msra.mxu0 0
  %71 = vmatprep.subr.bf16.mxu0 0
  %72 = vmatpush1.bf16.msra.mxu0 0
  %73 = vmatprep.subr.bf16.mxu0 0
  %74 = vmatpush1.bf16.msra.mxu0 0
  %75 = vmatprep.subr.bf16.mxu0 0
  %76 = vmatpush1.bf16.msra.mxu0 0
  %77 = vmatprep.subr.bf16.mxu0 0
  %78 = vmatpush1.bf16.msra.mxu0 0
  %79 = vmatprep.subr.bf16.mxu0 0
  %80 = vmatpush1.bf16.msra.mxu0 0
  %81 = vmatprep.subr.bf16.mxu0 0
  %82 = vmatpush1.bf16.msra.mxu0 0
  %83 = vmatprep.mubr.bf16.mxu0 0
  %84 = vmatmul.mubr.bf16.gmra.mrb[0].mxu0 %v49
  %v85 = vpop.f32.mrb[0].mxu0
  %v86 = vadd.f32 0.0, %v85
  %v87 = vpop.f32.mrb[0].mxu0
  %v88 = vpop.f32.mrb[0].mxu0
  %v89 = vadd.f32 0.0, %v88
  %v90 = vpop.f32.mrb[0].mxu0
  %91 = vdwg.mxu0
  %v92 = vadd.f32 %v22, %v86
  %v93 = vadd.f32 %v23, %v89
  %vm94 = vcmask 785408
  %95 = vst.msk [vmem:[#allocation2] sm:$0xff] %vm94, %v92
  %96 = vst.msk [vmem:[#allocation2 + $0x8] sm:$0xff] %vm94, %v93
  // Predicated region
  $region18: #{trans_gc_forward.13} parent=0 // pred_check
    %p97 = pneg %p15
  $region19: #{trans_gc_forward.13} parent=0 // pred_check_branch
    %99 = sbr.rel (%p97) target = $region21
  $region20: #{trans_gc_forward.13} parent=0 // pred_region
    %v100 = vld [vmem:[#allocation2] sm:$0xff]
    %v101 = vld [vmem:[#allocation2 + $0x8] sm:$0xff]
    %v102 = vld [vmem:[%s2] sm:$0x1]
    %v104 = vlaneseq
    %v105 = vshrl.u32 %v104, 7
    %v106 = vsub.s32 0, %v105
    %v107 = vrot.slane %v102, %v106
    %v109 = vadd.f32 %v100, %v107
    %v110 = vadd.f32 %v101, %v107
    %v111 = vpack.c.bf16 %v110, %v109
    %v113 = vunpack.c.l.b16 %v111
    %v114 = vunpack.c.h.b16 %v111
    %v115 = vpack.c.b16 %v113, %v113
    %v116 = vpack.c.b16 %v114, %v114
    %vm119 = vcmask 781312
    %120 = vst.msk [vmem:[%s3] sm:$0xf] %vm119, %v115
    %121 = vst.msk [vmem:[%s3 + $0x4] sm:$0xf] %vm119, %v116
  $region21: #{trans_gc_forward.13} parent=0 // pred_fallthru
    _
  // Predicated region
  $region22: #{trans_gc_forward.13} parent=0 // pred_check
    _
  $region23: #{trans_gc_forward.13} parent=0 // pred_check_branch
    %123 = sbr.rel (0) target = $region25
  $region24: #{trans_gc_forward.13} parent=0 // pred_region
    _
  $region25: #{trans_gc_forward.13} parent=0 // pred_fallthru
    _
  // Predicated region
  $region26: #{trans_gc_forward.13} parent=0 // pred_check
    _
  $region27: #{trans_gc_forward.13} parent=0 // pred_check_branch
    %125 = sbr.rel (0) target = $region29
  $region28: #{trans_gc_forward.13} parent=0 // pred_region
    _
  $region29: #{trans_gc_forward.13} parent=0 // pred_fallthru
    _

// kernel: trans_gc_forward.14
$region0: #{trans_gc_forward.14}
  #allocation0 [shape = 'u32[]', space=smem, size = 0x4, offset = 0x4, fixed_abs, tag = 'smem constant byte address 0x4 - core index']
  #allocation1 [shape = 'u32[144,128]{1,0:T(1,128)}', space=vmem, size = 0x12000, scoped, tag = 'internal scratch']
  %s0 = inlined_call_operand.vmem [shape: bf16[2,8,96], index: 0, kind: input, shape index: {}]
  %s1 = inlined_call_operand.vmem [shape: f32[2,1,8], index: 1, kind: input, shape index: {}]
  %s2 = inlined_call_operand.vmem [shape: bf16[2,8,32], index: 2, kind: output, shape index: {}]
  %s3 = sld [smem:[#allocation0]]
  $region41: #{trans_gc_forward.14} parent=0
    _
  %s5 = ssub.s32 1, %s3
  %s6 = scalar_select 0, %s5, %s3
  loop: start=0, step=1, limit=4
  $region2: #{trans_gc_forward.14} parent=0 // loop_pre_header
    _
  $region3: #{trans_gc_forward.14} parent=0 // loop_header
    %s8 = sphi 0, %s12
    %p9 = scmp.ge.s32.totalorder %s8, 4
    %s15 = sphi 0, %s27
    %s16 = sphi 0, %s23
    %s17 = sphi 0, %s15
    %s18 = sphi 0, %s16
    %s19 = sphi 0, %s17
    %s20 = sphi 0, %s18
    %s30 = sphi 0, %s32
    %s33 = sphi 0, %s30
    %s34 = sphi 0, %s33
    %s50 = sphi 0, %s34
    %s56 = sphi 0, %s58
    %s59 = sphi 0, %s56
    %s60 = sphi 0, %s59
    %s76 = sphi 0, %s60
    %s84 = sphi 0, %s86
    %s87 = sphi 0, %s84
    %s88 = sphi 0, %s87
    %s104 = sphi 0, %s88
  $region4: #{trans_gc_forward.14} parent=0 // loop_header_branch
    %11 = sbr.rel (%p9) target = $region8
  $region5: #{trans_gc_forward.14} parent=0 // loop_body
    %s13 = ssub.s32 %s8, 1
    %s14 = ssub.s32 %s8, 2
    %s21 = sadd.s32 1, %s16
    %p22 = scmp.ge.s32.totalorder %s21, 1
    %s23 = scalar_select %p22, 0, %s21
    %s24 = sadd.s32 1, %s15
    %s25 = scalar_select %p22, %s24, %s15
    %p26 = scmp.ge.s32.totalorder %s25, 2
    %s27 = scalar_select %p26, 0, %s25
    %s28 = ssub.s32 %s15, %s27
    %p29 = scmp.eq.s32.totalorder %s28, 0
    %s31 = sadd.s32 %s30, 1
    %s32 = scalar_select %p29, %s30, %s31
    %p35 = pneg %p29
    %p36 = scmp.eq.s32.totalorder %s8, 1
    %p37 = por %p35, %p36
    %p38 = scmp.ne.s32.totalorder %s30, %s33
    %p39 = scmp.eq.s32.totalorder %s8, 0
    %p40 = por %p38, %p39
    %p41 = scmp.ne.s32.totalorder %s30, %s33
    %p42 = scmp.eq.s32.totalorder %s13, 1
    %p43 = por %p41, %p42
    %p44 = scmp.ne.s32.totalorder %s33, %s34
    %p45 = scmp.eq.s32.totalorder %s13, 0
    %p46 = por %p44, %p45
    %p47 = scmp.ne.s32.totalorder %s33, %s34
    %p48 = scmp.eq.s32.totalorder %s14, 1
    %p49 = por %p47, %p48
    %p51 = scmp.ne.s32.totalorder %s34, %s50
    %p52 = scmp.eq.s32.totalorder %s14, 0
    %p53 = por %p51, %p52
    %s54 = ssub.s32 %s15, %s27
    %p55 = scmp.eq.s32.totalorder %s54, 0
    %s57 = sadd.s32 %s56, 1
    %s58 = scalar_select %p55, %s56, %s57
    %p61 = pneg %p55
    %p62 = scmp.eq.s32.totalorder %s8, 1
    %p63 = por %p61, %p62
    %p64 = scmp.ne.s32.totalorder %s56, %s59
    %p65 = scmp.eq.s32.totalorder %s8, 0
    %p66 = por %p64, %p65
    %p67 = scmp.ne.s32.totalorder %s56, %s59
    %p68 = scmp.eq.s32.totalorder %s13, 1
    %p69 = por %p67, %p68
    %p70 = scmp.ne.s32.totalorder %s59, %s60
    %p71 = scmp.eq.s32.totalorder %s13, 0
    %p72 = por %p70, %p71
    %p73 = scmp.ne.s32.totalorder %s59, %s60
    %p74 = scmp.eq.s32.totalorder %s14, 1
    %p75 = por %p73, %p74
    %p77 = scmp.ne.s32.totalorder %s60, %s76
    %p78 = scmp.eq.s32.totalorder %s14, 0
    %p79 = por %p77, %p78
    %s80 = ssub.s32 %s15, %s27
    %s81 = ssub.s32 %s16, %s23
    %s82 = sor.u32 %s80, %s81
    %p83 = scmp.eq.s32.totalorder %s82, 0
    %s85 = sadd.s32 %s84, 1
    %s86 = scalar_select %p83, %s84, %s85
    %p89 = pneg %p83
    %p90 = scmp.eq.s32.totalorder %s8, 1
    %p91 = por %p89, %p90
    %p92 = scmp.ne.s32.totalorder %s84, %s87
    %p93 = scmp.eq.s32.totalorder %s8, 0
    %p94 = por %p92, %p93
    %p95 = scmp.ne.s32.totalorder %s84, %s87
    %p96 = scmp.eq.s32.totalorder %s13, 1
    %p97 = por %p95, %p96
    %p98 = scmp.ne.s32.totalorder %s87, %s88
    %p99 = scmp.eq.s32.totalorder %s13, 0
    %p100 = por %p98, %p99
    %p101 = scmp.ne.s32.totalorder %s87, %s88
    %p102 = scmp.eq.s32.totalorder %s14, 1
    %p103 = por %p101, %p102
    %p105 = scmp.ne.s32.totalorder %s88, %s104
    %p106 = scmp.eq.s32.totalorder %s14, 0
    %p107 = por %p105, %p106
    %p108 = scmp.le.s32.totalorder 1, %s8
    %p109 = scmp.lt.s32.totalorder %s8, 3
    %p110 = pnand %p108, %p109
    %p111 = pneg %p110
    // Predicated region
    $region9: #{trans_gc_forward.14} parent=5 // pred_check
      _
    $region10: #{trans_gc_forward.14} parent=5 // pred_check_branch
      %113 = sbr.rel (%p110) target = $region12
    $region11: #{trans_gc_forward.14} parent=5 // pred_region
      %s114 = ssub.s32 %s8, 1
    $region12: #{trans_gc_forward.14} parent=5 // pred_fallthru
      _
    %p115 = scmp.lt.s32.totalorder %s8, 2
    // Predicated region
    $region13: #{trans_gc_forward.14} parent=5 // pred_check
      %p116 = pneg %p115
    $region14: #{trans_gc_forward.14} parent=5 // pred_check_branch
      %118 = sbr.rel (%p116) target = $region16
    $region15: #{trans_gc_forward.14} parent=5 // pred_region
      // Predicated region
      $region17: #{trans_gc_forward.14} parent=15 // pred_check
        %p119 = pneg %p40
      $region18: #{trans_gc_forward.14} parent=15 // pred_check_branch
        %121 = sbr.rel (%p119) target = $region20
      $region19: #{trans_gc_forward.14} parent=15 // pred_region
        %p122 = scmp.lt.s32.totalorder %s15, 1
        %s123 = scalar_select %p122, %s15, 1
        %s124 = smul.addr %s123, 4
        %s125 = scalar_lea.vmem %s0, %s124
      $region20: #{trans_gc_forward.14} parent=15 // pred_fallthru
        _
      // Predicated region
      $region21: #{trans_gc_forward.14} parent=15 // pred_check
        %p126 = pneg %p66
      $region22: #{trans_gc_forward.14} parent=15 // pred_check_branch
        %128 = sbr.rel (%p126) target = $region24
      $region23: #{trans_gc_forward.14} parent=15 // pred_region
        %p129 = scmp.lt.s32.totalorder %s15, 1
        %s130 = scalar_select %p129, %s15, 1
        %s131 = scalar_lea.vmem %s1, %s130
      $region24: #{trans_gc_forward.14} parent=15 // pred_fallthru
        _
    $region16: #{trans_gc_forward.14} parent=5 // pred_fallthru
      _
    %p132 = scmp.le.s32.totalorder 1, %s8
    %p133 = scmp.lt.s32.totalorder %s8, 3
    %p134 = pnand %p132, %p133
    %p135 = pneg %p134
    // Predicated region
    $region25: #{trans_gc_forward.14} parent=5 // pred_check
      _
    $region26: #{trans_gc_forward.14} parent=5 // pred_check_branch
      %137 = sbr.rel (%p134) target = $region28
    $region27: #{trans_gc_forward.14} parent=5 // pred_region
      %s138 = ssub.s32 %s8, 1
      %p139 = scmp.lt.s32.totalorder %s17, 1
      %s140 = scalar_select %p139, %s17, 1
      %s141 = smul.addr %s140, 4
      %s142 = scalar_lea.vmem %s0, %s141
      %p143 = pneg %p46
      %p144 = pneg %p43
      %p145 = scmp.lt.s32.totalorder %s17, 1
      %s146 = scalar_select %p145, %s17, 1
      %s147 = scalar_lea.vmem %s1, %s146
      %p148 = pneg %p72
      %p149 = pneg %p69
      %p150 = pneg %p100
      %p151 = pneg %p97
      %p152 = scmp.lt.s32.totalorder %s17, 1
      %s153 = scalar_select %p152, %s17, 1
      %p154 = scmp.lt.s32.totalorder %s18, 0
      %s155 = scalar_select %p154, %s18, 0
      %s156 = sadd.s32 %s155, %s153
      %s157 = smul.addr %s156, 4
      %s158 = scalar_lea.vmem %s2, %s157
      %p159 = scmp.lt.s32.totalorder %s17, 1
      %s160 = scalar_select %p159, %s17, 1
      %s161 = smul.addr %s160, 4
      %s162 = scalar_lea.vmem %s0, %s161
      %p163 = scmp.lt.s32.totalorder %s17, 1
      %s164 = scalar_select %p163, %s17, 1
      %s165 = scalar_lea.vmem %s1, %s164
      %p166 = scmp.lt.s32.totalorder %s17, 1
      %s167 = scalar_select %p166, %s17, 1
      %p168 = scmp.lt.s32.totalorder %s18, 0
      %s169 = scalar_select %p168, %s18, 0
      %s170 = sadd.s32 %s169, %s167
      %s171 = smul.addr %s170, 4
      %s172 = scalar_lea.vmem %s2, %s171
      %s174 = smul.u32 %s18, 8
      %v175 = vld [vmem:[%s165] sm:$0x1]
      %s176 = sshra.s32 %s174, 3
      %s177 = sand.u32 %s174, 7
      %s178 = smul.addr %s176, 4
      %s179 = scalar_lea.vmem %s162, %s178
      %v180 = vld [vmem:[%s179] sm:$0xf]
      %v181 = vld [vmem:[%s162] sm:$0xf]
      %v183 = vlaneseq
      %v184 = vshrl.u32 %v183, 7
      %v185 = vsub.s32 0, %v184
      %v186 = vrot.slane %v175, %v185
      %v189 = vunpack.c.l.b16 %v181
      %v190 = vpack.c.b16 %v189, %v189
      %191 = vrot.lane.b32.xlu0 %v190, 96
      %v192 = vpop.permute.xlu0 %191
      %vm193 = vcmask 64512
      %v195 = vsel %vm193, %v180, 0
      %v198 = vsel %vm193, %v192, 0
      %200 = vmatprep.subr.bf16.mxu0 0
      %201 = vmatpush1.bf16.xpose.msra.mxu0 %v198
      %202 = vmatprep.subr.bf16.mxu0 0
      %203 = vmatpush1.bf16.xpose.msra.mxu0 0
      %204 = vmatprep.subr.bf16.mxu0 0
      %205 = vmatpush1.bf16.xpose.msra.mxu0 0
      %206 = vmatprep.subr.bf16.mxu0 0
      %207 = vmatpush1.bf16.xpose.msra.mxu0 0
      %208 = vmatprep.subr.bf16.mxu0 0
      %209 = vmatpush1.bf16.xpose.msra.mxu0 0
      %210 = vmatprep.subr.bf16.mxu0 0
      %211 = vmatpush1.bf16.xpose.msra.mxu0 0
      %212 = vmatprep.subr.bf16.mxu0 0
      %213 = vmatpush1.bf16.xpose.msra.mxu0 0
      %214 = vmatprep.subr.bf16.mxu0 0
      %215 = vmatpush1.bf16.xpose.msra.mxu0 0
      %216 = vmatprep.subr.bf16.mxu0 0
      %217 = vmatpush1.bf16.xpose.msra.mxu0 0
      %218 = vmatprep.subr.bf16.mxu0 0
      %219 = vmatpush1.bf16.xpose.msra.mxu0 0
      %220 = vmatprep.subr.bf16.mxu0 0
      %221 = vmatpush1.bf16.xpose.msra.mxu0 0
      %222 = vmatprep.subr.bf16.mxu0 0
      %223 = vmatpush1.bf16.xpose.msra.mxu0 0
      %224 = vmatprep.subr.bf16.mxu0 0
      %225 = vmatpush1.bf16.xpose.msra.mxu0 0
      %226 = vmatprep.subr.bf16.mxu0 0
      %227 = vmatpush1.bf16.xpose.msra.mxu0 0
      %228 = vmatprep.subr.bf16.mxu0 0
      %229 = vmatpush1.bf16.xpose.msra.mxu0 0
      %230 = vmatprep.subr.bf16.mxu0 0
      %231 = vmatpush1.bf16.xpose.msra.mxu0 0
      %232 = vmatprep.mubr.bf16.mxu0 0
      %233 = vmatmul.mubr.bf16.gmra.mrb[0].mxu0 %v195
      %v234 = vpop.f32.mrb[0].mxu0
      %v235 = vadd.f32 %v186, %v234
      %v236 = vpop.f32.mrb[0].mxu0
      %v237 = vpop.f32.mrb[0].mxu0
      %v238 = vpop.f32.mrb[0].mxu0
      %239 = vdwg.mxu0
      %v240 = vsel %vm193, %v235, -inf
      %241 = vmax.xlane.f32.xlu0 %v240
      %v242 = vpop.xlane.xlu0 %241
      %v243 = vsub.f32 %v235, %v242
      %v244 = vmul.f32 %v243, 1.442695
      %v245 = vpow.pop %v244
      %v246 = vsel %vm193, %v245, 0.0
      %247 = vadd.xlane.f32.xlu0 %v246
      %v248 = vpop.xlane.xlu0 %247
      %v249 = vrcp.pop %v248
      %v250 = vmul.f32 %v245, %v249
      %v251 = vpack.c.bf16 %v250, %v250
      %252 = vrot.lane.b32.xlu0 %v190, 64
      %v253 = vpop.permute.xlu0 %252
      %v255 = vsel %vm193, %v251, 0
      %vm257 = vcmask 1043456
      %v259 = vsel %vm257, %v253, 0
      %261 = vmatprep.subr.bf16.mxu0 0
      %262 = vmatpush1.bf16.msra.mxu0 %v259
      %263 = vmatprep.subr.bf16.mxu0 0
      %264 = vmatpush1.bf16.msra.mxu0 0
      %265 = vmatprep.subr.bf16.mxu0 0
      %266 = vmatpush1.bf16.msra.mxu0 0
      %267 = vmatprep.subr.bf16.mxu0 0
      %268 = vmatpush1.bf16.msra.mxu0 0
      %269 = vmatprep.subr.bf16.mxu0 0
      %270 = vmatpush1.bf16.msra.mxu0 0
      %271 = vmatprep.subr.bf16.mxu0 0
      %272 = vmatpush1.bf16.msra.mxu0 0
      %273 = vmatprep.subr.bf16.mxu0 0
      %274 = vmatpush1.bf16.msra.mxu0 0
      %275 = vmatprep.subr.bf16.mxu0 0
      %276 = vmatpush1.bf16.msra.mxu0 0
      %277 = vmatprep.subr.bf16.mxu0 0
      %278 = vmatpush1.bf16.msra.mxu0 0
      %279 = vmatprep.subr.bf16.mxu0 0
      %280 = vmatpush1.bf16.msra.mxu0 0
      %281 = vmatprep.subr.bf16.mxu0 0
      %282 = vmatpush1.bf16.msra.mxu0 0
      %283 = vmatprep.subr.bf16.mxu0 0
      %284 = vmatpush1.bf16.msra.mxu0 0
      %285 = vmatprep.subr.bf16.mxu0 0
      %286 = vmatpush1.bf16.msra.mxu0 0
      %287 = vmatprep.subr.bf16.mxu0 0
      %288 = vmatpush1.bf16.msra.mxu0 0
      %289 = vmatprep.subr.bf16.mxu0 0
      %290 = vmatpush1.bf16.msra.mxu0 0
      %291 = vmatprep.subr.bf16.mxu0 0
      %292 = vmatpush1.bf16.msra.mxu0 0
      %293 = vmatprep.mubr.bf16.mxu0 0
      %294 = vmatmul.mubr.bf16.gmra.mrb[0].mxu0 %v255
      %v295 = vpop.f32.mrb[0].mxu0
      %v296 = vadd.f32 0.0, %v295
      %v297 = vpop.f32.mrb[0].mxu0
      %v298 = vpop.f32.mrb[0].mxu0
      %v299 = vpop.f32.mrb[0].mxu0
      %300 = vdwg.mxu0
      %v301 = vpack.c.bf16 %v296, %v296
      %vm302 = vcmask 60416
      %303 = vst.msk [vmem:[%s172] sm:$0xf] %vm302, %v301
      %v304 = vld [vmem:[%s179] sm:$0xf]
      %v305 = vld [vmem:[%s162] sm:$0xf]
      %v307 = vunpack.c.l.b16 %v304
      %v308 = vpack.c.b16 %v307, %v307
      %309 = vrot.lane.b32.xlu0 %v308, 120
      %v310 = vpop.permute.xlu0 %309
      %v312 = vunpack.c.l.b16 %v305
      %v313 = vpack.c.b16 %v312, %v312
      %314 = vrot.lane.b32.xlu0 %v313, 88
      %v315 = vpop.permute.xlu0 %314
      %v317 = vsel %vm193, %v310, 0
      %v320 = vsel %vm193, %v315, 0
      %322 = vmatprep.subr.bf16.mxu0 0
      %323 = vmatpush1.bf16.xpose.msra.mxu0 %v320
      %324 = vmatprep.subr.bf16.mxu0 0
      %325 = vmatpush1.bf16.xpose.msra.mxu0 0
      %326 = vmatprep.subr.bf16.mxu0 0
      %327 = vmatpush1.bf16.xpose.msra.mxu0 0
      %328 = vmatprep.subr.bf16.mxu0 0
      %329 = vmatpush1.bf16.xpose.msra.mxu0 0
      %330 = vmatprep.subr.bf16.mxu0 0
      %331 = vmatpush1.bf16.xpose.msra.mxu0 0
      %332 = vmatprep.subr.bf16.mxu0 0
      %333 = vmatpush1.bf16.xpose.msra.mxu0 0
      %334 = vmatprep.subr.bf16.mxu0 0
      %335 = vmatpush1.bf16.xpose.msra.mxu0 0
      %336 = vmatprep.subr.bf16.mxu0 0
      %337 = vmatpush1.bf16.xpose.msra.mxu0 0
      %338 = vmatprep.subr.bf16.mxu0 0
      %339 = vmatpush1.bf16.xpose.msra.mxu0 0
      %340 = vmatprep.subr.bf16.mxu0 0
      %341 = vmatpush1.bf16.xpose.msra.mxu0 0
      %342 = vmatprep.subr.bf16.mxu0 0
      %343 = vmatpush1.bf16.xpose.msra.mxu0 0
      %344 = vmatprep.subr.bf16.mxu0 0
      %345 = vmatpush1.bf16.xpose.msra.mxu0 0
      %346 = vmatprep.subr.bf16.mxu0 0
      %347 = vmatpush1.bf16.xpose.msra.mxu0 0
      %348 = vmatprep.subr.bf16.mxu0 0
      %349 = vmatpush1.bf16.xpose.msra.mxu0 0
      %350 = vmatprep.subr.bf16.mxu0 0
      %351 = vmatpush1.bf16.xpose.msra.mxu0 0
      %352 = vmatprep.subr.bf16.mxu0 0
      %353 = vmatpush1.bf16.xpose.msra.mxu0 0
      %354 = vmatprep.mubr.bf16.mxu0 0
      %355 = vmatmul.mubr.bf16.gmra.mrb[0].mxu0 %v317
      %v356 = vpop.f32.mrb[0].mxu0
      %v357 = vadd.f32 %v186, %v356
      %v358 = vpop.f32.mrb[0].mxu0
      %v359 = vpop.f32.mrb[0].mxu0
      %v360 = vpop.f32.mrb[0].mxu0
      %361 = vdwg.mxu0
      %v362 = vsel %vm193, %v357, -inf
      %363 = vmax.xlane.f32.xlu0 %v362
      %v364 = vpop.xlane.xlu0 %363
      %v365 = vsub.f32 %v357, %v364
      %v366 = vmul.f32 %v365, 1.442695
      %v367 = vpow.pop %v366
      %v368 = vsel %vm193, %v367, 0.0
      %369 = vadd.xlane.f32.xlu0 %v368
      %v370 = vpop.xlane.xlu0 %369
      %v371 = vrcp.pop %v370
      %v372 = vmul.f32 %v367, %v371
      %v373 = vpack.c.bf16 %v372, %v372
      %374 = vrot.lane.b32.xlu0 %v313, 56
      %v375 = vpop.permute.xlu0 %374
      %v377 = vsel %vm193, %v373, 0
      %v380 = vsel %vm257, %v375, 0
      %382 = vmatprep.subr.bf16.mxu0 0
      %383 = vmatpush1.bf16.msra.mxu0 %v380
      %384 = vmatprep.subr.bf16.mxu0 0
      %385 = vmatpush1.bf16.msra.mxu0 0
      %386 = vmatprep.subr.bf16.mxu0 0
      %387 = vmatpush1.bf16.msra.mxu0 0
      %388 = vmatprep.subr.bf16.mxu0 0
      %389 = vmatpush1.bf16.msra.mxu0 0
      %390 = vmatprep.subr.bf16.mxu0 0
      %391 = vmatpush1.bf16.msra.mxu0 0
      %392 = vmatprep.subr.bf16.mxu0 0
      %393 = vmatpush1.bf16.msra.mxu0 0
      %394 = vmatprep.subr.bf16.mxu0 0
      %395 = vmatpush1.bf16.msra.mxu0 0
      %396 = vmatprep.subr.bf16.mxu0 0
      %397 = vmatpush1.bf16.msra.mxu0 0
      %398 = vmatprep.subr.bf16.mxu0 0
      %399 = vmatpush1.bf16.msra.mxu0 0
      %400 = vmatprep.subr.bf16.mxu0 0
      %401 = vmatpush1.bf16.msra.mxu0 0
      %402 = vmatprep.subr.bf16.mxu0 0
      %403 = vmatpush1.bf16.msra.mxu0 0
      %404 = vmatprep.subr.bf16.mxu0 0
      %405 = vmatpush1.bf16.msra.mxu0 0
      %406 = vmatprep.subr.bf16.mxu0 0
      %407 = vmatpush1.bf16.msra.mxu0 0
      %408 = vmatprep.subr.bf16.mxu0 0
      %409 = vmatpush1.bf16.msra.mxu0 0
      %410 = vmatprep.subr.bf16.mxu0 0
      %411 = vmatpush1.bf16.msra.mxu0 0
      %412 = vmatprep.subr.bf16.mxu0 0
      %413 = vmatpush1.bf16.msra.mxu0 0
      %414 = vmatprep.mubr.bf16.mxu0 0
      %415 = vmatmul.mubr.bf16.gmra.mrb[0].mxu0 %v377
      %v416 = vpop.f32.mrb[0].mxu0
      %v417 = vadd.f32 0.0, %v416
      %v418 = vpop.f32.mrb[0].mxu0
      %v419 = vpop.f32.mrb[0].mxu0
      %v420 = vpop.f32.mrb[0].mxu0
      %421 = vdwg.mxu0
      %v422 = vpack.c.bf16 %v417, %v417
      %v424 = vunpack.c.l.b16 %v422
      %v425 = vpack.c.b16 %v424, %v424
      %426 = vrot.lane.b32.xlu0 %v425, 8
      %v427 = vpop.permute.xlu0 %426
      %vm429 = vcmask 126016
      %430 = vst.msk [vmem:[%s172] sm:$0xf] %vm429, %v427
      %v431 = vld [vmem:[%s179] sm:$0xf]
      %v432 = vld [vmem:[%s162] sm:$0xf]
      %v434 = vunpack.c.l.b16 %v431
      %v435 = vpack.c.b16 %v434, %v434
      %436 = vrot.lane.b32.xlu0 %v435, 112
      %v437 = vpop.permute.xlu0 %436
      %v439 = vunpack.c.l.b16 %v432
      %v440 = vpack.c.b16 %v439, %v439
      %441 = vrot.lane.b32.xlu0 %v440, 80
      %v442 = vpop.permute.xlu0 %441
      %v444 = vsel %vm193, %v437, 0
      %v447 = vsel %vm193, %v442, 0
      %449 = vmatprep.subr.bf16.mxu0 0
      %450 = vmatpush1.bf16.xpose.msra.mxu0 %v447
      %451 = vmatprep.subr.bf16.mxu0 0
      %452 = vmatpush1.bf16.xpose.msra.mxu0 0
      %453 = vmatprep.subr.bf16.mxu0 0
      %454 = vmatpush1.bf16.xpose.msra.mxu0 0
      %455 = vmatprep.subr.bf16.mxu0 0
      %456 = vmatpush1.bf16.xpose.msra.mxu0 0
      %457 = vmatprep.subr.bf16.mxu0 0
      %458 = vmatpush1.bf16.xpose.msra.mxu0 0
      %459 = vmatprep.subr.bf16.mxu0 0
      %460 = vmatpush1.bf16.xpose.msra.mxu0 0
      %461 = vmatprep.subr.bf16.mxu0 0
      %462 = vmatpush1.bf16.xpose.msra.mxu0 0
      %463 = vmatprep.subr.bf16.mxu0 0
      %464 = vmatpush1.bf16.xpose.msra.mxu0 0
      %465 = vmatprep.subr.bf16.mxu0 0
      %466 = vmatpush1.bf16.xpose.msra.mxu0 0
      %467 = vmatprep.subr.bf16.mxu0 0
      %468 = vmatpush1.bf16.xpose.msra.mxu0 0
      %469 = vmatprep.subr.bf16.mxu0 0
      %470 = vmatpush1.bf16.xpose.msra.mxu0 0
      %471 = vmatprep.subr.bf16.mxu0 0
      %472 = vmatpush1.bf16.xpose.msra.mxu0 0
      %473 = vmatprep.subr.bf16.mxu0 0
      %474 = vmatpush1.bf16.xpose.msra.mxu0 0
      %475 = vmatprep.subr.bf16.mxu0 0
      %476 = vmatpush1.bf16.xpose.msra.mxu0 0
      %477 = vmatprep.subr.bf16.mxu0 0
      %478 = vmatpush1.bf16.xpose.msra.mxu0 0
      %479 = vmatprep.subr.bf16.mxu0 0
      %480 = vmatpush1.bf16.xpose.msra.mxu0 0
      %481 = vmatprep.mubr.bf16.mxu0 0
      %482 = vmatmul.mubr.bf16.gmra.mrb[0].mxu0 %v444
      %v483 = vpop.f32.mrb[0].mxu0
      %v484 = vadd.f32 %v186, %v483
      %v485 = vpop.f32.mrb[0].mxu0
      %v486 = vpop.f32.mrb[0].mxu0
      %v487 = vpop.f32.mrb[0].mxu0
      %488 = vdwg.mxu0
      %v489 = vsel %vm193, %v484, -inf
      %490 = vmax.xlane.f32.xlu0 %v489
      %v491 = vpop.xlane.xlu0 %490
      %v492 = vsub.f32 %v484, %v491
      %v493 = vmul.f32 %v492, 1.442695
      %v494 = vpow.pop %v493
      %v495 = vsel %vm193, %v494, 0.0
      %496 = vadd.xlane.f32.xlu0 %v495
      %v497 = vpop.xlane.xlu0 %496
      %v498 = vrcp.pop %v497
      %v499 = vmul.f32 %v494, %v498
      %v500 = vpack.c.bf16 %v499, %v499
      %501 = vrot.lane.b32.xlu0 %v440, 48
      %v502 = vpop.permute.xlu0 %501
      %v504 = vsel %vm193, %v500, 0
      %v507 = vsel %vm257, %v502, 0
      %509 = vmatprep.subr.bf16.mxu0 0
      %510 = vmatpush1.bf16.msra.mxu0 %v507
      %511 = vmatprep.subr.bf16.mxu0 0
      %512 = vmatpush1.bf16.msra.mxu0 0
      %513 = vmatprep.subr.bf16.mxu0 0
      %514 = vmatpush1.bf16.msra.mxu0 0
      %515 = vmatprep.subr.bf16.mxu0 0
      %516 = vmatpush1.bf16.msra.mxu0 0
      %517 = vmatprep.subr.bf16.mxu0 0
      %518 = vmatpush1.bf16.msra.mxu0 0
      %519 = vmatprep.subr.bf16.mxu0 0
      %520 = vmatpush1.bf16.msra.mxu0 0
      %521 = vmatprep.subr.bf16.mxu0 0
      %522 = vmatpush1.bf16.msra.mxu0 0
      %523 = vmatprep.subr.bf16.mxu0 0
      %524 = vmatpush1.bf16.msra.mxu0 0
      %525 = vmatprep.subr.bf16.mxu0 0
      %526 = vmatpush1.bf16.msra.mxu0 0
      %527 = vmatprep.subr.bf16.mxu0 0
      %528 = vmatpush1.bf16.msra.mxu0 0
      %529 = vmatprep.subr.bf16.mxu0 0
      %530 = vmatpush1.bf16.msra.mxu0 0
      %531 = vmatprep.subr.bf16.mxu0 0
      %532 = vmatpush1.bf16.msra.mxu0 0
      %533 = vmatprep.subr.bf16.mxu0 0
      %534 = vmatpush1.bf16.msra.mxu0 0
      %535 = vmatprep.subr.bf16.mxu0 0
      %536 = vmatpush1.bf16.msra.mxu0 0
      %537 = vmatprep.subr.bf16.mxu0 0
      %538 = vmatpush1.bf16.msra.mxu0 0
      %539 = vmatprep.subr.bf16.mxu0 0
      %540 = vmatpush1.bf16.msra.mxu0 0
      %541 = vmatprep.mubr.bf16.mxu0 0
      %542 = vmatmul.mubr.bf16.gmra.mrb[0].mxu0 %v504
      %v543 = vpop.f32.mrb[0].mxu0
      %v544 = vadd.f32 0.0, %v543
      %v545 = vpop.f32.mrb[0].mxu0
      %v546 = vpop.f32.mrb[0].mxu0
      %v547 = vpop.f32.mrb[0].mxu0
      %548 = vdwg.mxu0
      %v549 = vpack.c.bf16 %v544, %v544
      %v551 = vunpack.c.l.b16 %v549
      %v552 = vpack.c.b16 %v551, %v551
      %553 = vrot.lane.b32.xlu0 %v552, 16
      %v554 = vpop.permute.xlu0 %553
      %vm556 = vcmask 191616
      %557 = vst.msk [vmem:[%s172] sm:$0xf] %vm556, %v554
      %v558 = vld [vmem:[%s179] sm:$0xf]
      %v559 = vld [vmem:[%s162] sm:$0xf]
      %v561 = vunpack.c.l.b16 %v558
      %v562 = vpack.c.b16 %v561, %v561
      %563 = vrot.lane.b32.xlu0 %v562, 104
      %v564 = vpop.permute.xlu0 %563
      %v566 = vunpack.c.l.b16 %v559
      %v567 = vpack.c.b16 %v566, %v566
      %568 = vrot.lane.b32.xlu0 %v567, 72
      %v569 = vpop.permute.xlu0 %568
      %v571 = vsel %vm193, %v564, 0
      %v574 = vsel %vm193, %v569, 0
      %576 = vmatprep.subr.bf16.mxu0 0
      %577 = vmatpush1.bf16.xpose.msra.mxu0 %v574
      %578 = vmatprep.subr.bf16.mxu0 0
      %579 = vmatpush1.bf16.xpose.msra.mxu0 0
      %580 = vmatprep.subr.bf16.mxu0 0
      %581 = vmatpush1.bf16.xpose.msra.mxu0 0
      %582 = vmatprep.subr.bf16.mxu0 0
      %583 = vmatpush1.bf16.xpose.msra.mxu0 0
      %584 = vmatprep.subr.bf16.mxu0 0
      %585 = vmatpush1.bf16.xpose.msra.mxu0 0
      %586 = vmatprep.subr.bf16.mxu0 0
      %587 = vmatpush1.bf16.xpose.msra.mxu0 0
      %588 = vmatprep.subr.bf16.mxu0 0
      %589 = vmatpush1.bf16.xpose.msra.mxu0 0
      %590 = vmatprep.subr.bf16.mxu0 0
      %591 = vmatpush1.bf16.xpose.msra.mxu0 0
      %592 = vmatprep.subr.bf16.mxu0 0
      %593 = vmatpush1.bf16.xpose.msra.mxu0 0
      %594 = vmatprep.subr.bf16.mxu0 0
      %595 = vmatpush1.bf16.xpose.msra.mxu0 0
      %596 = vmatprep.subr.bf16.mxu0 0
      %597 = vmatpush1.bf16.xpose.msra.mxu0 0
      %598 = vmatprep.subr.bf16.mxu0 0
      %599 = vmatpush1.bf16.xpose.msra.mxu0 0
      %600 = vmatprep.subr.bf16.mxu0 0
      %601 = vmatpush1.bf16.xpose.msra.mxu0 0
      %602 = vmatprep.subr.bf16.mxu0 0
      %603 = vmatpush1.bf16.xpose.msra.mxu0 0
      %604 = vmatprep.subr.bf16.mxu0 0
      %605 = vmatpush1.bf16.xpose.msra.mxu0 0
      %606 = vmatprep.subr.bf16.mxu0 0
      %607 = vmatpush1.bf16.xpose.msra.mxu0 0
      %608 = vmatprep.mubr.bf16.mxu0 0
      %609 = vmatmul.mubr.bf16.gmra.mrb[0].mxu0 %v571
      %v610 = vpop.f32.mrb[0].mxu0
      %v611 = vadd.f32 %v186, %v610
      %v612 = vpop.f32.mrb[0].mxu0
      %v613 = vpop.f32.mrb[0].mxu0
      %v614 = vpop.f32.mrb[0].mxu0
      %615 = vdwg.mxu0
      %v616 = vsel %vm193, %v611, -inf
      %617 = vmax.xlane.f32.xlu0 %v616
      %v618 = vpop.xlane.xlu0 %617
      %v619 = vsub.f32 %v611, %v618
      %v620 = vmul.f32 %v619, 1.442695
      %v621 = vpow.pop %v620
      %v622 = vsel %vm193, %v621, 0.0
      %623 = vadd.xlane.f32.xlu0 %v622
      %v624 = vpop.xlane.xlu0 %623
      %v625 = vrcp.pop %v624
      %v626 = vmul.f32 %v621, %v625
      %v627 = vpack.c.bf16 %v626, %v626
      %628 = vrot.lane.b32.xlu0 %v567, 40
      %v629 = vpop.permute.xlu0 %628
      %v631 = vsel %vm193, %v627, 0
      %v634 = vsel %vm257, %v629, 0
      %636 = vmatprep.subr.bf16.mxu0 0
      %637 = vmatpush1.bf16.msra.mxu0 %v634
      %638 = vmatprep.subr.bf16.mxu0 0
      %639 = vmatpush1.bf16.msra.mxu0 0
      %640 = vmatprep.subr.bf16.mxu0 0
      %641 = vmatpush1.bf16.msra.mxu0 0
      %642 = vmatprep.subr.bf16.mxu0 0
      %643 = vmatpush1.bf16.msra.mxu0 0
      %644 = vmatprep.subr.bf16.mxu0 0
      %645 = vmatpush1.bf16.msra.mxu0 0
      %646 = vmatprep.subr.bf16.mxu0 0
      %647 = vmatpush1.bf16.msra.mxu0 0
      %648 = vmatprep.subr.bf16.mxu0 0
      %649 = vmatpush1.bf16.msra.mxu0 0
      %650 = vmatprep.subr.bf16.mxu0 0
      %651 = vmatpush1.bf16.msra.mxu0 0
      %652 = vmatprep.subr.bf16.mxu0 0
      %653 = vmatpush1.bf16.msra.mxu0 0
      %654 = vmatprep.subr.bf16.mxu0 0
      %655 = vmatpush1.bf16.msra.mxu0 0
      %656 = vmatprep.subr.bf16.mxu0 0
      %657 = vmatpush1.bf16.msra.mxu0 0
      %658 = vmatprep.subr.bf16.mxu0 0
      %659 = vmatpush1.bf16.msra.mxu0 0
      %660 = vmatprep.subr.bf16.mxu0 0
      %661 = vmatpush1.bf16.msra.mxu0 0
      %662 = vmatprep.subr.bf16.mxu0 0
      %663 = vmatpush1.bf16.msra.mxu0 0
      %664 = vmatprep.subr.bf16.mxu0 0
      %665 = vmatpush1.bf16.msra.mxu0 0
      %666 = vmatprep.subr.bf16.mxu0 0
      %667 = vmatpush1.bf16.msra.mxu0 0
      %668 = vmatprep.mubr.bf16.mxu0 0
      %669 = vmatmul.mubr.bf16.gmra.mrb[0].mxu0 %v631
      %v670 = vpop.f32.mrb[0].mxu0
      %v671 = vadd.f32 0.0, %v670
      %v672 = vpop.f32.mrb[0].mxu0
      %v673 = vpop.f32.mrb[0].mxu0
      %v674 = vpop.f32.mrb[0].mxu0
      %675 = vdwg.mxu0
      %v676 = vpack.c.bf16 %v671, %v671
      %v678 = vunpack.c.l.b16 %v676
      %v679 = vpack.c.b16 %v678, %v678
      %680 = vrot.lane.b32.xlu0 %v679, 24
      %v681 = vpop.permute.xlu0 %680
      %vm683 = vcmask 257216
      %684 = vst.msk [vmem:[%s172] sm:$0xf] %vm683, %v681
      %p685 = scmp.lt.s32.totalorder %s17, 1
      %s686 = scalar_select %p685, %s17, 1
      %p687 = scmp.lt.s32.totalorder %s18, 0
      %s688 = scalar_select %p687, %s18, 0
      %s689 = sadd.s32 %s688, %s686
      %s690 = smul.addr %s689, 4
      %s691 = scalar_lea.vmem %s2, %s690
      // Predicated region
      $region29: #{trans_gc_forward.14} parent=27 // pred_check
        %p692 = pneg %p97
      $region30: #{trans_gc_forward.14} parent=27 // pred_check_branch
        %694 = sbr.rel (%p692) target = $region32
      $region31: #{trans_gc_forward.14} parent=27 // pred_region
        _
      $region32: #{trans_gc_forward.14} parent=27 // pred_fallthru
        _
    $region28: #{trans_gc_forward.14} parent=5 // pred_fallthru
      _
    %p695 = scmp.le.s32.totalorder 2, %s8
    // Predicated region
    $region33: #{trans_gc_forward.14} parent=5 // pred_check
      %p696 = pneg %p695
    $region34: #{trans_gc_forward.14} parent=5 // pred_check_branch
      %698 = sbr.rel (%p696) target = $region36
    $region35: #{trans_gc_forward.14} parent=5 // pred_region
      %s699 = ssub.s32 %s8, 2
      // Predicated region
      $region37: #{trans_gc_forward.14} parent=35 // pred_check
        %p700 = pneg %p103
      $region38: #{trans_gc_forward.14} parent=35 // pred_check_branch
        %702 = sbr.rel (%p700) target = $region40
      $region39: #{trans_gc_forward.14} parent=35 // pred_region
        %p703 = scmp.lt.s32.totalorder %s19, 1
        %s704 = scalar_select %p703, %s19, 1
        %p705 = scmp.lt.s32.totalorder %s20, 0
        %s706 = scalar_select %p705, %s20, 0
        %s707 = sadd.s32 %s706, %s704
        %s708 = smul.addr %s707, 4
        %s709 = scalar_lea.vmem %s2, %s708
      $region40: #{trans_gc_forward.14} parent=35 // pred_fallthru
        _
    $region36: #{trans_gc_forward.14} parent=5 // pred_fallthru
      _
  $region6: #{trans_gc_forward.14} parent=0 // loop_footer
    %s12 = sadd.s32 1, %s8
  $region7: #{trans_gc_forward.14} parent=0 // loop_footer_branch
    %7 = sbr.rel target = $region3
  $region8: #{trans_gc_forward.14} parent=0 // loop_exit
    _

// kernel: trans_gc_forward.17
$region0: #{trans_gc_forward.17}
  #allocation0 [shape = 'u32[]', space=smem, size = 0x4, offset = 0x4, fixed_abs, tag = 'smem constant byte address 0x4 - core index']
  #allocation1 [shape = 'u32[144,128]{1,0:T(1,128)}', space=vmem, size = 0x12000, scoped, tag = 'internal scratch']
  #allocation2 [shape = 'f32[16,32]{1,0:T(8,128)}', space=vmem, size = 0x2000, scoped, tag = 'scratch operand']
  %s0 = inlined_call_operand.vmem [shape: bf16[16,64], index: 0, kind: input, shape index: {}]
  %s1 = inlined_call_operand.vmem [shape: bf16[64,32], index: 1, kind: input, shape index: {}]
  %s2 = inlined_call_operand.vmem [shape: f32[1,32], index: 2, kind: input, shape index: {}]
  %s3 = inlined_call_operand.vmem [shape: bf16[16,32], index: 3, kind: input, shape index: {}]
  %s4 = inlined_call_operand.vmem [shape: f32[1,32], index: 4, kind: input, shape index: {}]
  %s5 = inlined_call_operand.vmem [shape: f32[1,32], index: 5, kind: input, shape index: {}]
  %s6 = inlined_call_operand.vmem [shape: bf16[16,32], index: 6, kind: output, shape index: {}]
  %s7 = sld [smem:[#allocation0]]
  $region42: #{trans_gc_forward.17} parent=0
    _
  %s9 = ssub.s32 1, %s7
  %s10 = scalar_select 0, %s9, %s7
  // Predicated region
  $region2: #{trans_gc_forward.17} parent=0 // pred_check
    _
  $region3: #{trans_gc_forward.17} parent=0 // pred_check_branch
    %12 = sbr.rel (0) target = $region5
  $region4: #{trans_gc_forward.17} parent=0 // pred_region
    _
  $region5: #{trans_gc_forward.17} parent=0 // pred_fallthru
    _
  // Predicated region
  $region6: #{trans_gc_forward.17} parent=0 // pred_check
    _
  $region7: #{trans_gc_forward.17} parent=0 // pred_check_branch
    %14 = sbr.rel (0) target = $region9
  $region8: #{trans_gc_forward.17} parent=0 // pred_region
    _
  $region9: #{trans_gc_forward.17} parent=0 // pred_fallthru
    _
  // Predicated region
  $region10: #{trans_gc_forward.17} parent=0 // pred_check
    _
  $region11: #{trans_gc_forward.17} parent=0 // pred_check_branch
    %16 = sbr.rel (0) target = $region13
  $region12: #{trans_gc_forward.17} parent=0 // pred_region
    _
  $region13: #{trans_gc_forward.17} parent=0 // pred_fallthru
    _
  // Predicated region
  $region14: #{trans_gc_forward.17} parent=0 // pred_check
    _
  $region15: #{trans_gc_forward.17} parent=0 // pred_check_branch
    %18 = sbr.rel (0) target = $region17
  $region16: #{trans_gc_forward.17} parent=0 // pred_region
    _
  $region17: #{trans_gc_forward.17} parent=0 // pred_fallthru
    _
  // Predicated region
  $region18: #{trans_gc_forward.17} parent=0 // pred_check
    _
  $region19: #{trans_gc_forward.17} parent=0 // pred_check_branch
    %20 = sbr.rel (0) target = $region21
  $region20: #{trans_gc_forward.17} parent=0 // pred_region
    _
  $region21: #{trans_gc_forward.17} parent=0 // pred_fallthru
    _
  // Predicated region
  $region22: #{trans_gc_forward.17} parent=0 // pred_check
    _
  $region23: #{trans_gc_forward.17} parent=0 // pred_check_branch
    %22 = sbr.rel (0) target = $region25
  $region24: #{trans_gc_forward.17} parent=0 // pred_region
    _
  $region25: #{trans_gc_forward.17} parent=0 // pred_fallthru
    _
  %p24 = scmp.eq.s32.totalorder 0, 0
  // Predicated region
  $region26: #{trans_gc_forward.17} parent=0 // pred_check
    %p25 = pneg %p24
  $region27: #{trans_gc_forward.17} parent=0 // pred_check_branch
    %27 = sbr.rel (%p25) target = $region29
  $region28: #{trans_gc_forward.17} parent=0 // pred_region
    %vm28 = vcmask 261120
    %29 = vst.msk [vmem:[#allocation2] sm:$0xff] %vm28, 0.0
    %30 = vst.msk [vmem:[#allocation2 + $0x8] sm:$0xff] %vm28, 0.0
  $region29: #{trans_gc_forward.17} parent=0 // pred_fallthru
    _
  %v31 = vld [vmem:[#allocation2] sm:$0xff]
  %v32 = vld [vmem:[#allocation2 + $0x8] sm:$0xff]
  %v33 = vld [vmem:[%s0] sm:$0xf]
  %v34 = vld [vmem:[%s0 + $0x4] sm:$0xf]
  %v35 = vld [vmem:[%s1] sm:$0xf]
  %v36 = vld [vmem:[%s1 + $0x4] sm:$0xf]
  %v37 = vld [vmem:[%s1 + $0x8] sm:$0xf]
  %v38 = vld [vmem:[%s1 + $0xc] sm:$0xf]
  %v39 = vld [vmem:[%s1 + $0x10] sm:$0xf]
  %v40 = vld [vmem:[%s1 + $0x14] sm:$0xf]
  %v41 = vld [vmem:[%s1 + $0x18] sm:$0xf]
  %v42 = vld [vmem:[%s1 + $0x1c] sm:$0xf]
  %v45 = vunpack.c.l.b16 %v33
  %v46 = vunpack.c.l.b16 %v34
  %v47 = vpack.c.b16 %v46, %v45
  %v56 = vunpack.c.l.b16 %v35
  %v57 = vunpack.c.l.b16 %v36
  %v58 = vunpack.c.l.b16 %v37
  %v59 = vunpack.c.l.b16 %v38
  %v60 = vunpack.c.l.b16 %v39
  %v61 = vunpack.c.l.b16 %v40
  %v62 = vunpack.c.l.b16 %v41
  %v63 = vunpack.c.l.b16 %v42
  %v64 = vpack.c.b16 %v57, %v56
  %v65 = vpack.c.b16 %v59, %v58
  %v66 = vpack.c.b16 %v61, %v60
  %v67 = vpack.c.b16 %v63, %v62
  %vm72 = vcmask 523264
  %v74 = vsel %vm72, %v47, 0
  %76 = vmatprep.subr.bf16.mxu0 0
  %77 = vmatpush1.bf16.msra.mxu0 %v64
  %78 = vmatprep.subr.bf16.mxu0 0
  %79 = vmatpush1.bf16.msra.mxu0 %v65
  %80 = vmatprep.subr.bf16.mxu0 0
  %81 = vmatpush1.bf16.msra.mxu0 %v66
  %82 = vmatprep.subr.bf16.mxu0 0
  %83 = vmatpush1.bf16.msra.mxu0 %v67
  %84 = vmatprep.subr.bf16.mxu0 0
  %85 = vmatpush1.bf16.msra.mxu0 0
  %86 = vmatprep.subr.bf16.mxu0 0
  %87 = vmatpush1.bf16.msra.mxu0 0
  %88 = vmatprep.subr.bf16.mxu0 0
  %89 = vmatpush1.bf16.msra.mxu0 0
  %90 = vmatprep.subr.bf16.mxu0 0
  %91 = vmatpush1.bf16.msra.mxu0 0
  %92 = vmatprep.subr.bf16.mxu0 0
  %93 = vmatpush1.bf16.msra.mxu0 0
  %94 = vmatprep.subr.bf16.mxu0 0
  %95 = vmatpush1.bf16.msra.mxu0 0
  %96 = vmatprep.subr.bf16.mxu0 0
  %97 = vmatpush1.bf16.msra.mxu0 0
  %98 = vmatprep.subr.bf16.mxu0 0
  %99 = vmatpush1.bf16.msra.mxu0 0
  %100 = vmatprep.subr.bf16.mxu0 0
  %101 = vmatpush1.bf16.msra.mxu0 0
  %102 = vmatprep.subr.bf16.mxu0 0
  %103 = vmatpush1.bf16.msra.mxu0 0
  %104 = vmatprep.subr.bf16.mxu0 0
  %105 = vmatpush1.bf16.msra.mxu0 0
  %106 = vmatprep.subr.bf16.mxu0 0
  %107 = vmatpush1.bf16.msra.mxu0 0
  %108 = vmatprep.mubr.bf16.mxu0 0
  %109 = vmatmul.mubr.bf16.gmra.mrb[0].mxu0 %v74
  %v110 = vpop.f32.mrb[0].mxu0
  %v111 = vadd.f32 0.0, %v110
  %v112 = vpop.f32.mrb[0].mxu0
  %v113 = vpop.f32.mrb[0].mxu0
  %v114 = vadd.f32 0.0, %v113
  %v115 = vpop.f32.mrb[0].mxu0
  %116 = vdwg.mxu0
  %v117 = vadd.f32 %v31, %v111
  %v118 = vadd.f32 %v32, %v114
  %vm119 = vcmask 261120
  %120 = vst.msk [vmem:[#allocation2] sm:$0xff] %vm119, %v117
  %121 = vst.msk [vmem:[#allocation2 + $0x8] sm:$0xff] %vm119, %v118
  // Predicated region
  $region30: #{trans_gc_forward.17} parent=0 // pred_check
    %p122 = pneg %p24
  $region31: #{trans_gc_forward.17} parent=0 // pred_check_branch
    %124 = sbr.rel (%p122) target = $region33
  $region32: #{trans_gc_forward.17} parent=0 // pred_region
    %v125 = vld [vmem:[#allocation2] sm:$0xff]
    %v126 = vld [vmem:[#allocation2 + $0x8] sm:$0xff]
    %v127 = vld [vmem:[%s2] sm:$0x1]
    %v129 = vlaneseq
    %v130 = vshrl.u32 %v129, 7
    %v131 = vsub.s32 0, %v130
    %v132 = vrot.slane %v127, %v131
    %v134 = vadd.f32 %v125, %v132
    %v135 = vadd.f32 %v126, %v132
    %v136 = vld [vmem:[%s3] sm:$0xf]
    %v137 = vld [vmem:[%s3 + $0x4] sm:$0xf]
    %v138 = vunpack.c.l.bf16 %v136
    %v139 = vunpack.c.l.bf16 %v137
    %v140 = vadd.f32 %v134, %v138
    %v141 = vadd.f32 %v135, %v139
    %v142 = vsel %vm119, %v140, 0.0
    %143 = vadd.xlane.f32.xlu0 %v142
    %v144 = vpop.xlane.xlu0 %143
    %v145 = vsel %vm119, %v141, 0.0
    %146 = vadd.xlane.f32.xlu0 %v145
    %v147 = vpop.xlane.xlu0 %146
    %v148 = vrcp.pop 32.0
    %v149 = vmul.f32 %v144, %v148
    %v150 = vmul.f32 %v147, %v148
    %v151 = vsub.f32 %v140, %v149
    %v152 = vsub.f32 %v141, %v150
    %v153 = vmul.f32 %v151, %v151
    %v154 = vmul.f32 %v152, %v152
    %v155 = vsel %vm119, %v153, 0.0
    %156 = vadd.xlane.f32.xlu0 %v155
    %v157 = vpop.xlane.xlu0 %156
    %v158 = vsel %vm119, %v154, 0.0
    %159 = vadd.xlane.f32.xlu0 %v158
    %v160 = vpop.xlane.xlu0 %159
    %v161 = vmul.f32 %v157, %v148
    %v162 = vmul.f32 %v160, %v148
    %v163 = vadd.f32 %v161, 1e-12
    %v164 = vadd.f32 %v162, 1e-12
    %v165 = vrsqrt.pop %v163
    %v166 = vrsqrt.pop %v164
    %v167 = vmul.f32 %v151, %v165
    %v168 = vmul.f32 %v152, %v166
    %v169 = vld [vmem:[%s4] sm:$0x1]
    %v171 = vlaneseq
    %v172 = vshrl.u32 %v171, 7
    %v173 = vsub.s32 0, %v172
    %v174 = vrot.slane %v169, %v173
    %v176 = vmul.f32 %v167, %v174
    %v177 = vmul.f32 %v168, %v174
    %v178 = vld [vmem:[%s5] sm:$0x1]
    %v180 = vlaneseq
    %v181 = vshrl.u32 %v180, 7
    %v182 = vsub.s32 0, %v181
    %v183 = vrot.slane %v178, %v182
    %v185 = vadd.f32 %v176, %v183
    %v186 = vadd.f32 %v177, %v183
    %v187 = vpack.c.bf16 %v186, %v185
    %v189 = vunpack.c.l.b16 %v187
    %v190 = vunpack.c.h.b16 %v187
    %v191 = vpack.c.b16 %v189, %v189
    %v192 = vpack.c.b16 %v190, %v190
    %vm195 = vcmask 257024
    %196 = vst.msk [vmem:[%s6] sm:$0xf] %vm195, %v191
    %197 = vst.msk [vmem:[%s6 + $0x4] sm:$0xf] %vm195, %v192
  $region33: #{trans_gc_forward.17} parent=0 // pred_fallthru
    _
  // Predicated region
  $region34: #{trans_gc_forward.17} parent=0 // pred_check
    _
  $region35: #{trans_gc_forward.17} parent=0 // pred_check_branch
    %199 = sbr.rel (0) target = $region37
  $region36: #{trans_gc_forward.17} parent=0 // pred_region
    _
  $region37: #{trans_gc_forward.17} parent=0 // pred_fallthru
    _
  // Predicated region
  $region38: #{trans_gc_forward.17} parent=0 // pred_check
    _
  $region39: #{trans_gc_forward.17} parent=0 // pred_check_branch
    %201 = sbr.rel (0) target = $region41
  $region40: #{trans_gc_forward.17} parent=0 // pred_region
    _
  $region41: #{trans_gc_forward.17} parent=0 // pred_fallthru
    _

// kernel: trans_gc_forward.16
$region0: #{trans_gc_forward.16}
  #allocation0 [shape = 'u32[]', space=smem, size = 0x4, offset = 0x4, fixed_abs, tag = 'smem constant byte address 0x4 - core index']
  #allocation1 [shape = 'u32[144,128]{1,0:T(1,128)}', space=vmem, size = 0x12000, scoped, tag = 'internal scratch']
  #allocation2 [shape = 'f32[16,64]{1,0:T(8,128)}', space=vmem, size = 0x2000, scoped, tag = 'scratch operand']
  %s0 = inlined_call_operand.vmem [shape: bf16[16,32], index: 0, kind: input, shape index: {}]
  %s1 = inlined_call_operand.vmem [shape: bf16[32,64], index: 1, kind: input, shape index: {}]
  %s2 = inlined_call_operand.vmem [shape: f32[1,64], index: 2, kind: input, shape index: {}]
  %s3 = inlined_call_operand.vmem [shape: bf16[16,64], index: 3, kind: output, shape index: {}]
  %s4 = sld [smem:[#allocation0]]
  $region30: #{trans_gc_forward.16} parent=0
    _
  %s6 = ssub.s32 1, %s4
  %s7 = scalar_select 0, %s6, %s4
  // Predicated region
  $region2: #{trans_gc_forward.16} parent=0 // pred_check
    _
  $region3: #{trans_gc_forward.16} parent=0 // pred_check_branch
    %9 = sbr.rel (0) target = $region5
  $region4: #{trans_gc_forward.16} parent=0 // pred_region
    _
  $region5: #{trans_gc_forward.16} parent=0 // pred_fallthru
    _
  // Predicated region
  $region6: #{trans_gc_forward.16} parent=0 // pred_check
    _
  $region7: #{trans_gc_forward.16} parent=0 // pred_check_branch
    %11 = sbr.rel (0) target = $region9
  $region8: #{trans_gc_forward.16} parent=0 // pred_region
    _
  $region9: #{trans_gc_forward.16} parent=0 // pred_fallthru
    _
  // Predicated region
  $region10: #{trans_gc_forward.16} parent=0 // pred_check
    _
  $region11: #{trans_gc_forward.16} parent=0 // pred_check_branch
    %13 = sbr.rel (0) target = $region13
  $region12: #{trans_gc_forward.16} parent=0 // pred_region
    _
  $region13: #{trans_gc_forward.16} parent=0 // pred_fallthru
    _
  %p15 = scmp.eq.s32.totalorder 0, 0
  // Predicated region
  $region14: #{trans_gc_forward.16} parent=0 // pred_check
    %p16 = pneg %p15
  $region15: #{trans_gc_forward.16} parent=0 // pred_check_branch
    %18 = sbr.rel (%p16) target = $region17
  $region16: #{trans_gc_forward.16} parent=0 // pred_region
    %vm19 = vcmask 523264
    %20 = vst.msk [vmem:[#allocation2] sm:$0xff] %vm19, 0.0
    %21 = vst.msk [vmem:[#allocation2 + $0x8] sm:$0xff] %vm19, 0.0
  $region17: #{trans_gc_forward.16} parent=0 // pred_fallthru
    _
  %v22 = vld [vmem:[#allocation2] sm:$0xff]
  %v23 = vld [vmem:[#allocation2 + $0x8] sm:$0xff]
  %v24 = vld [vmem:[%s0] sm:$0xf]
  %v25 = vld [vmem:[%s0 + $0x4] sm:$0xf]
  %v26 = vld [vmem:[%s1] sm:$0xf]
  %v27 = vld [vmem:[%s1 + $0x4] sm:$0xf]
  %v28 = vld [vmem:[%s1 + $0x8] sm:$0xf]
  %v29 = vld [vmem:[%s1 + $0xc] sm:$0xf]
  %v32 = vunpack.c.l.b16 %v24
  %v33 = vunpack.c.l.b16 %v25
  %v34 = vpack.c.b16 %v33, %v32
  %v39 = vunpack.c.l.b16 %v26
  %v40 = vunpack.c.l.b16 %v27
  %v41 = vunpack.c.l.b16 %v28
  %v42 = vunpack.c.l.b16 %v29
  %v43 = vpack.c.b16 %v40, %v39
  %v44 = vpack.c.b16 %v42, %v41
  %vm47 = vcmask 261120
  %v49 = vsel %vm47, %v34, 0
  %51 = vmatprep.subr.bf16.mxu0 0
  %52 = vmatpush1.bf16.msra.mxu0 %v43
  %53 = vmatprep.subr.bf16.mxu0 0
  %54 = vmatpush1.bf16.msra.mxu0 %v44
  %55 = vmatprep.subr.bf16.mxu0 0
  %56 = vmatpush1.bf16.msra.mxu0 0
  %57 = vmatprep.subr.bf16.mxu0 0
  %58 = vmatpush1.bf16.msra.mxu0 0
  %59 = vmatprep.subr.bf16.mxu0 0
  %60 = vmatpush1.bf16.msra.mxu0 0
  %61 = vmatprep.subr.bf16.mxu0 0
  %62 = vmatpush1.bf16.msra.mxu0 0
  %63 = vmatprep.subr.bf16.mxu0 0
  %64 = vmatpush1.bf16.msra.mxu0 0
  %65 = vmatprep.subr.bf16.mxu0 0
  %66 = vmatpush1.bf16.msra.mxu0 0
  %67 = vmatprep.subr.bf16.mxu0 0
  %68 = vmatpush1.bf16.msra.mxu0 0
  %69 = vmatprep.subr.bf16.mxu0 0
  %70 = vmatpush1.bf16.msra.mxu0 0
  %71 = vmatprep.subr.bf16.mxu0 0
  %72 = vmatpush1.bf16.msra.mxu0 0
  %73 = vmatprep.subr.bf16.mxu0 0
  %74 = vmatpush1.bf16.msra.mxu0 0
  %75 = vmatprep.subr.bf16.mxu0 0
  %76 = vmatpush1.bf16.msra.mxu0 0
  %77 = vmatprep.subr.bf16.mxu0 0
  %78 = vmatpush1.bf16.msra.mxu0 0
  %79 = vmatprep.subr.bf16.mxu0 0
  %80 = vmatpush1.bf16.msra.mxu0 0
  %81 = vmatprep.subr.bf16.mxu0 0
  %82 = vmatpush1.bf16.msra.mxu0 0
  %83 = vmatprep.mubr.bf16.mxu0 0
  %84 = vmatmul.mubr.bf16.gmra.mrb[0].mxu0 %v49
  %v85 = vpop.f32.mrb[0].mxu0
  %v86 = vadd.f32 0.0, %v85
  %v87 = vpop.f32.mrb[0].mxu0
  %v88 = vpop.f32.mrb[0].mxu0
  %v89 = vadd.f32 0.0, %v88
  %v90 = vpop.f32.mrb[0].mxu0
  %91 = vdwg.mxu0
  %v92 = vadd.f32 %v22, %v86
  %v93 = vadd.f32 %v23, %v89
  %vm94 = vcmask 523264
  %95 = vst.msk [vmem:[#allocation2] sm:$0xff] %vm94, %v92
  %96 = vst.msk [vmem:[#allocation2 + $0x8] sm:$0xff] %vm94, %v93
  // Predicated region
  $region18: #{trans_gc_forward.16} parent=0 // pred_check
    %p97 = pneg %p15
  $region19: #{trans_gc_forward.16} parent=0 // pred_check_branch
    %99 = sbr.rel (%p97) target = $region21
  $region20: #{trans_gc_forward.16} parent=0 // pred_region
    %v100 = vld [vmem:[#allocation2] sm:$0xff]
    %v101 = vld [vmem:[#allocation2 + $0x8] sm:$0xff]
    %v102 = vld [vmem:[%s2] sm:$0x1]
    %v104 = vlaneseq
    %v105 = vshrl.u32 %v104, 7
    %v106 = vsub.s32 0, %v105
    %v107 = vrot.slane %v102, %v106
    %v109 = vadd.f32 %v100, %v107
    %v110 = vadd.f32 %v101, %v107
    %v111 = vmul.f32 %v109, %v109
    %v112 = vmul.f32 %v110, %v110
    %v113 = vmul.f32 %v109, %v111
    %v114 = vmul.f32 %v110, %v112
    %v115 = vmul.f32 %v113, 0.044715
    %v116 = vmul.f32 %v114, 0.044715
    %v117 = vadd.f32 %v109, %v115
    %v118 = vadd.f32 %v110, %v116
    %v119 = vmul.f32 %v117, 0.7978846
    %v120 = vmul.f32 %v118, 0.7978846
    %v121 = vtanh.pop %v119
    %v122 = vtanh.pop %v120
    %v123 = vadd.f32 %v121, 1.0
    %v124 = vadd.f32 %v122, 1.0
    %v125 = vmul.f32 %v123, 0.5
    %v126 = vmul.f32 %v124, 0.5
    %v127 = vmul.f32 %v109, %v125
    %v128 = vmul.f32 %v110, %v126
    %v129 = vpack.c.bf16 %v128, %v127
    %v131 = vunpack.c.l.b16 %v129
    %v132 = vunpack.c.h.b16 %v129
    %v133 = vpack.c.b16 %v131, %v131
    %v134 = vpack.c.b16 %v132, %v132
    %vm137 = vcmask 519168
    %138 = vst.msk [vmem:[%s3] sm:$0xf] %vm137, %v133
    %139 = vst.msk [vmem:[%s3 + $0x4] sm:$0xf] %vm137, %v134
  $region21: #{trans_gc_forward.16} parent=0 // pred_fallthru
    _
  // Predicated region
  $region22: #{trans_gc_forward.16} parent=0 // pred_check
    _
  $region23: #{trans_gc_forward.16} parent=0 // pred_check_branch
    %141 = sbr.rel (0) target = $region25
  $region24: #{trans_gc_forward.16} parent=0 // pred_region
    _
  $region25: #{trans_gc_forward.16} parent=0 // pred_fallthru
    _
  // Predicated region
  $region26: #{trans_gc_forward.16} parent=0 // pred_check
    _
  $region27: #{trans_gc_forward.16} parent=0 // pred_check_branch
    %143 = sbr.rel (0) target = $region29
  $region28: #{trans_gc_forward.16} parent=0 // pred_region
    _
  $region29: #{trans_gc_forward.16} parent=0 // pred_fallthru
    _

// kernel: trans_gc_forward.23
$region0: #{trans_gc_forward.23}
  #allocation0 [shape = 'u32[]', space=smem, size = 0x4, offset = 0x4, fixed_abs, tag = 'smem constant byte address 0x4 - core index']
  #allocation1 [shape = 'u32[144,128]{1,0:T(1,128)}', space=vmem, size = 0x12000, scoped, tag = 'internal scratch']
  #allocation2 [shape = 'f32[2,32]{1,0:T(2,128)}', space=vmem, size = 0x400, scoped, tag = 'scratch operand']
  %s0 = inlined_call_operand.vmem [shape: bf16[2,32], index: 0, kind: input, shape index: {}]
  %s1 = inlined_call_operand.vmem [shape: bf16[32,32], index: 1, kind: input, shape index: {}]
  %s2 = inlined_call_operand.vmem [shape: f32[1,32], index: 2, kind: input, shape index: {}]
  %s3 = inlined_call_operand.vmem [shape: f32[2,32], index: 3, kind: output, shape index: {}]
  %s4 = sld [smem:[#allocation0]]
  $region30: #{trans_gc_forward.23} parent=0
    _
  %s6 = ssub.s32 1, %s4
  %s7 = scalar_select 0, %s6, %s4
  // Predicated region
  $region2: #{trans_gc_forward.23} parent=0 // pred_check
    _
  $region3: #{trans_gc_forward.23} parent=0 // pred_check_branch
    %9 = sbr.rel (0) target = $region5
  $region4: #{trans_gc_forward.23} parent=0 // pred_region
    _
  $region5: #{trans_gc_forward.23} parent=0 // pred_fallthru
    _
  // Predicated region
  $region6: #{trans_gc_forward.23} parent=0 // pred_check
    _
  $region7: #{trans_gc_forward.23} parent=0 // pred_check_branch
    %11 = sbr.rel (0) target = $region9
  $region8: #{trans_gc_forward.23} parent=0 // pred_region
    _
  $region9: #{trans_gc_forward.23} parent=0 // pred_fallthru
    _
  // Predicated region
  $region10: #{trans_gc_forward.23} parent=0 // pred_check
    _
  $region11: #{trans_gc_forward.23} parent=0 // pred_check_branch
    %13 = sbr.rel (0) target = $region13
  $region12: #{trans_gc_forward.23} parent=0 // pred_region
    _
  $region13: #{trans_gc_forward.23} parent=0 // pred_fallthru
    _
  %p15 = scmp.eq.s32.totalorder 0, 0
  // Predicated region
  $region14: #{trans_gc_forward.23} parent=0 // pred_check
    %p16 = pneg %p15
  $region15: #{trans_gc_forward.23} parent=0 // pred_check_branch
    %18 = sbr.rel (%p16) target = $region17
  $region16: #{trans_gc_forward.23} parent=0 // pred_region
    %vm19 = vcmask 254976
    %20 = vst.msk [vmem:[#allocation2] sm:$0x3] %vm19, 0.0
  $region17: #{trans_gc_forward.23} parent=0 // pred_fallthru
    _
  %v21 = vld [vmem:[#allocation2] sm:$0x3]
  %v22 = vld [vmem:[%s0] sm:$0x1]
  %v23 = vld [vmem:[%s1] sm:$0xf]
  %v24 = vld [vmem:[%s1 + $0x4] sm:$0xf]
  %v25 = vld [vmem:[%s1 + $0x8] sm:$0xf]
  %v26 = vld [vmem:[%s1 + $0xc] sm:$0xf]
  %v31 = vunpack.c.l.b16 %v23
  %v32 = vunpack.c.l.b16 %v24
  %v33 = vunpack.c.l.b16 %v25
  %v34 = vunpack.c.l.b16 %v26
  %v35 = vpack.c.b16 %v32, %v31
  %v36 = vpack.c.b16 %v34, %v33
  %vm39 = vcmask 261120
  %v41 = vsel %vm39, %v22, 0
  %43 = vmatprep.subr.bf16.mxu0 0
  %44 = vmatpush1.bf16.msra.mxu0 %v35
  %45 = vmatprep.subr.bf16.mxu0 0
  %46 = vmatpush1.bf16.msra.mxu0 %v36
  %47 = vmatprep.subr.bf16.mxu0 0
  %48 = vmatpush1.bf16.msra.mxu0 0
  %49 = vmatprep.subr.bf16.mxu0 0
  %50 = vmatpush1.bf16.msra.mxu0 0
  %51 = vmatprep.subr.bf16.mxu0 0
  %52 = vmatpush1.bf16.msra.mxu0 0
  %53 = vmatprep.subr.bf16.mxu0 0
  %54 = vmatpush1.bf16.msra.mxu0 0
  %55 = vmatprep.subr.bf16.mxu0 0
  %56 = vmatpush1.bf16.msra.mxu0 0
  %57 = vmatprep.subr.bf16.mxu0 0
  %58 = vmatpush1.bf16.msra.mxu0 0
  %59 = vmatprep.subr.bf16.mxu0 0
  %60 = vmatpush1.bf16.msra.mxu0 0
  %61 = vmatprep.subr.bf16.mxu0 0
  %62 = vmatpush1.bf16.msra.mxu0 0
  %63 = vmatprep.subr.bf16.mxu0 0
  %64 = vmatpush1.bf16.msra.mxu0 0
  %65 = vmatprep.subr.bf16.mxu0 0
  %66 = vmatpush1.bf16.msra.mxu0 0
  %67 = vmatprep.subr.bf16.mxu0 0
  %68 = vmatpush1.bf16.msra.mxu0 0
  %69 = vmatprep.subr.bf16.mxu0 0
  %70 = vmatpush1.bf16.msra.mxu0 0
  %71 = vmatprep.subr.bf16.mxu0 0
  %72 = vmatpush1.bf16.msra.mxu0 0
  %73 = vmatprep.subr.bf16.mxu0 0
  %74 = vmatpush1.bf16.msra.mxu0 0
  %75 = vmatprep.mubr.bf16.mxu0 0
  %76 = vmatmul.mubr.bf16.gmra.mrb[0].mxu0 %v41
  %v77 = vpop.f32.mrb[0].mxu0
  %v78 = vadd.f32 0.0, %v77
  %v79 = vpop.f32.mrb[0].mxu0
  %v80 = vpop.f32.mrb[0].mxu0
  %v81 = vpop.f32.mrb[0].mxu0
  %82 = vdwg.mxu0
  %v83 = vadd.f32 %v21, %v78
  %vm84 = vcmask 254976
  %85 = vst.msk [vmem:[#allocation2] sm:$0x3] %vm84, %v83
  // Predicated region
  $region18: #{trans_gc_forward.23} parent=0 // pred_check
    %p86 = pneg %p15
  $region19: #{trans_gc_forward.23} parent=0 // pred_check_branch
    %88 = sbr.rel (%p86) target = $region21
  $region20: #{trans_gc_forward.23} parent=0 // pred_region
    %v89 = vld [vmem:[#allocation2] sm:$0x3]
    %v90 = vld [vmem:[%s2] sm:$0x1]
    %v92 = vlaneseq
    %v93 = vshrl.u32 %v92, 7
    %v94 = vsub.s32 0, %v93
    %v95 = vrot.slane %v90, %v94
    %v97 = vadd.f32 %v89, %v95
    %v98 = vtanh.pop %v97
    %99 = vst.msk [vmem:[%s3] sm:$0x3] %vm84, %v98
  $region21: #{trans_gc_forward.23} parent=0 // pred_fallthru
    _
  // Predicated region
  $region22: #{trans_gc_forward.23} parent=0 // pred_check
    _
  $region23: #{trans_gc_forward.23} parent=0 // pred_check_branch
    %101 = sbr.rel (0) target = $region25
  $region24: #{trans_gc_forward.23} parent=0 // pred_region
    _
  $region25: #{trans_gc_forward.23} parent=0 // pred_fallthru
    _
  // Predicated region
  $region26: #{trans_gc_forward.23} parent=0 // pred_check
    _
  $region27: #{trans_gc_forward.23} parent=0 // pred_check_branch
    %103 = sbr.rel (0) target = $region29
  $region28: #{trans_gc_forward.23} parent=0 // pred_region
    _
  $region29: #{trans_gc_forward.23} parent=0 // pred_fallthru
    _

</llo_original>
